<compile_context>
chip_gen: v7x
topology: tpu7x:2x2x1
jax: 0.10.0
libtpu: 0.0.40
codegen_flags: <defaults>
</compile_context>

<pallas_src>
import functools
import math

import jax
import jax.numpy as jnp
from jax.experimental import pallas as pl
from jax.experimental.pallas import tpu as pltpu


# dot_general dimension numbers (no transposes anywhere):
_LAST_LAST = (((1,), (1,)), ((), ()))    # a @ b.T  : contract last axis of both
_LAST_FIRST = (((1,), (0,)), ((), ()))   # a @ b    : contract a[-1] with b[0]


# ----------------------------- Pallas kernel -------------------------------

def mha_kernel(xq_ref, xk_ref, xv_ref,
               wq_ref, wk_ref, wv_ref, wo_ref,
               bq_ref, bk_ref, bv_ref, bo_ref,
               y_ref, *, head_nums, mxu_dtype=None):
    """One batch element per grid step: fused QKV proj + attention + out proj."""

    def mm(a, b, dims):
        # Optionally feed the MXU bf16 operands (v6e/v7x); accumulate in f32.
        if mxu_dtype is not None:
            a = a.astype(mxu_dtype)
            b = b.astype(mxu_dtype)
        return jax.lax.dot_general(a, b, dims, preferred_element_type=jnp.float32)

    xq = xq_ref[0]                                    # (S, E)
    xk = xk_ref[0]
    xv = xv_ref[0]
    S, E = xq.shape
    d_k = E // head_nums
    scale = jnp.float32(1.0 / math.sqrt(d_k))

    # Fused Q/K/V projections: x @ W.T + b  (torch Linear layout: W is (out, in)).
    q = mm(xq, wq_ref[...], _LAST_LAST) + bq_ref[...]   # (S, E) f32
    k = mm(xk, wk_ref[...], _LAST_LAST) + bk_ref[...]
    v = mm(xv, wv_ref[...], _LAST_LAST) + bv_ref[...]

    # Causal mask built on the VPU from iotas; keep = (row >= col), i.e.
    # 1 - triu(ones, k=1) from the module's mask() helper.
    row = jax.lax.broadcasted_iota(jnp.int32, (S, S), 0)
    col = jax.lax.broadcasted_iota(jnp.int32, (S, S), 1)
    keep = row >= col

    head_outs = []
    for h in range(head_nums):                        # static unroll; lane slices
        sl = slice(h * d_k, (h + 1) * d_k)
        q_h, k_h, v_h = q[:, sl], k[:, sl], v[:, sl]  # (S, d_k)

        # scores = q_h @ k_h^T / sqrt(d_k)   (contract d_k of both, no transpose)
        scores = mm(q_h, k_h, _LAST_LAST) * scale     # (S, S) f32

        # torch: scores.masked_fill(mask == 0, 1e-09)  (fills the SCORE, not -inf)
        scores = jnp.where(keep, scores, jnp.float32(1e-09))

        # numerically stable softmax, kept in f32 (v5e-friendly)
        scores = scores - jnp.max(scores, axis=-1, keepdims=True)
        e = jnp.exp(scores)
        p = e * pl.reciprocal(jnp.sum(e, axis=-1, keepdims=True), approx=False)

        # TODO(synk): dropout(p_attn) skipped (identity / eval mode).

        head_outs.append(mm(p, v_h, _LAST_FIRST))     # (S, d_k) f32

    # Concat heads along E (matches torch transpose+reshape) and fuse the output
    # projection -> one lane-dense (S, E) store, no intermediate HBM tensor.
    out = jnp.concatenate(head_outs, axis=-1)         # (S, E)
    y = mm(out, wo_ref[...], _LAST_LAST) + bo_ref[...]
    y_ref[0] = y.astype(y_ref.dtype)


# ------------------------------ wrapper ------------------------------------

def multi_head_attention(params, query, key, value, head_nums, mxu_dtype=None):
    """Forward pass of MultiHeadAttention with a causal mask (dropout = identity)."""
    wq, bq, wk, bk, wv, bv, wo, bo = params
    B, S, E = query.shape
    assert E % head_nums == 0

    kernel = functools.partial(mha_kernel, head_nums=head_nums, mxu_dtype=mxu_dtype)

    act_spec = pl.BlockSpec((1, S, E), lambda b: (b, 0, 0))
    w_spec = pl.BlockSpec((E, E), lambda b: (0, 0))
    b_spec = pl.BlockSpec((1, E), lambda b: (0, 0))

    return pl.pallas_call(
        kernel,
        out_shape=jax.ShapeDtypeStruct((B, S, E), query.dtype),
        grid=(B,),
        in_specs=[act_spec, act_spec, act_spec,
                  w_spec, w_spec, w_spec, w_spec,
                  b_spec, b_spec, b_spec, b_spec],
        out_specs=act_spec,
        compiler_params=pltpu.CompilerParams(dimension_semantics=("parallel",)),
    )(query, key, value,
      wq, wk, wv, wo,
      bq.reshape(1, E), bk.reshape(1, E), bv.reshape(1, E), bo.reshape(1, E))


# --------------------------- reference & setup ------------------------------

def make_causal_mask(seq):
    """Equivalent of the torch `mask()` helper: 1 - triu(ones, k=1), shape (1,S,S)."""
    tri = jnp.triu(jnp.ones((seq, seq), dtype=jnp.int32), k=1)
    return (1 - tri)[None, :, :]                      # (1, S, S), 1 = keep


def reference_mha(params, query, key, value, mask_arr, head_nums):
    wq, bq, wk, bk, wv, bv, wo, bo = params
    B, S, E = query.shape
    d_k = E // head_nums

    def lin(x, w, b):
        return x @ w.T + b

    def split(t):
        return t.reshape(B, S, head_nums, d_k).transpose(0, 2, 1, 3)

    q, k, v = split(lin(query, wq, bq)), split(lin(key, wk, bk)), split(lin(value, wv, bv))
    scores = jnp.einsum("bhqd,bhkd->bhqk", q, k) / math.sqrt(d_k)
    m = mask_arr[:, None, :, :]                       # (1,1,S,S)
    scores = jnp.where(m == 0, 1e-09, scores)
    p = jax.nn.softmax(scores, axis=-1)
    out = jnp.einsum("bhqk,bhkd->bhqd", p, v)
    out = out.transpose(0, 2, 1, 3).reshape(B, S, E)
    return lin(out, wo, bo)


def init_params(key, embedding_dim):
    """Deterministic nn.Linear-style init: U(-1/sqrt(E), 1/sqrt(E))."""
    bound = 1.0 / math.sqrt(embedding_dim)
    keys = jax.random.split(key, 8)
    params = []
    for i in range(4):
        w = jax.random.uniform(keys[2 * i], (embedding_dim, embedding_dim),
                               jnp.float32, -bound, bound)
        b = jax.random.uniform(keys[2 * i + 1], (embedding_dim,),
                               jnp.float32, -bound, bound)
        params.extend([w, b])
    return tuple(params)


if __name__ == "__main__":
    head_nums = 4
    embedding_dim = 32
    batch = 2
    seq = 8

    root = jax.random.PRNGKey(0)
    k_param, k_q, k_k, k_v = jax.random.split(root, 4)

    params = init_params(k_param, embedding_dim)
    query = jax.random.normal(k_q, (batch, seq, embedding_dim), jnp.float32)
    key_ = jax.random.normal(k_k, (batch, seq, embedding_dim), jnp.float32)
    value = jax.random.normal(k_v, (batch, seq, embedding_dim), jnp.float32)

    out = multi_head_attention(params, query, key_, value, head_nums)
    out = jax.block_until_ready(out)

    mask_arr = make_causal_mask(seq)
    ref = reference_mha(params, query, key_, value, mask_arr, head_nums)
    assert out.shape == (batch, seq, embedding_dim)
    assert jnp.allclose(out, ref, rtol=1e-4, atol=1e-4), "mismatch vs JAX reference"

    print("KERNEL_OK")
</pallas_src>

<mosaic_0001>
module attributes {stable_mosaic.version = 11 : i64} {
  func.func @mha_kernel(%arg0: i32, %arg1: memref<1x8x32xf32, #tpu.memory_space<vmem>>, %arg2: memref<1x8x32xf32, #tpu.memory_space<vmem>>, %arg3: memref<1x8x32xf32, #tpu.memory_space<vmem>>, %arg4: memref<32x32xf32, #tpu.memory_space<vmem>>, %arg5: memref<32x32xf32, #tpu.memory_space<vmem>>, %arg6: memref<32x32xf32, #tpu.memory_space<vmem>>, %arg7: memref<32x32xf32, #tpu.memory_space<vmem>>, %arg8: memref<1x32xf32, #tpu.memory_space<vmem>>, %arg9: memref<1x32xf32, #tpu.memory_space<vmem>>, %arg10: memref<1x32xf32, #tpu.memory_space<vmem>>, %arg11: memref<1x32xf32, #tpu.memory_space<vmem>>, %arg12: memref<1x8x32xf32, #tpu.memory_space<vmem>>) attributes {dimension_semantics = [#tpu.dimension_semantics<parallel>], iteration_bounds = array<i64: 2>, scalar_prefetch = 0 : i64, scratch_operands = 0 : i64, tpu.core_type = #tpu.core_type<tc>, window_params = [{transform_indices = @transform_0, window_bounds = array<i64: 1, 8, 32>}, {transform_indices = @transform_1, window_bounds = array<i64: 1, 8, 32>}, {transform_indices = @transform_2, window_bounds = array<i64: 1, 8, 32>}, {pipeline_mode = #tpu.pipeline_mode<synchronous>, transform_indices = @transform_3, window_bounds = array<i64: 32, 32>}, {pipeline_mode = #tpu.pipeline_mode<synchronous>, transform_indices = @transform_4, window_bounds = array<i64: 32, 32>}, {pipeline_mode = #tpu.pipeline_mode<synchronous>, transform_indices = @transform_5, window_bounds = array<i64: 32, 32>}, {pipeline_mode = #tpu.pipeline_mode<synchronous>, transform_indices = @transform_6, window_bounds = array<i64: 32, 32>}, {pipeline_mode = #tpu.pipeline_mode<synchronous>, transform_indices = @transform_7, window_bounds = array<i64: 1, 32>}, {pipeline_mode = #tpu.pipeline_mode<synchronous>, transform_indices = @transform_8, window_bounds = array<i64: 1, 32>}, {pipeline_mode = #tpu.pipeline_mode<synchronous>, transform_indices = @transform_9, window_bounds = array<i64: 1, 32>}, {pipeline_mode = #tpu.pipeline_mode<synchronous>, transform_indices = @transform_10, window_bounds = array<i64: 1, 32>}, {transform_indices = @transform_11, window_bounds = array<i64: 1, 8, 32>}]} {
    %c0 = arith.constant 0 : index
    %c0_0 = arith.constant 0 : index
    %c0_1 = arith.constant 0 : index
    %0 = vector.load %arg1[%c0, %c0_0, %c0_1] : memref<1x8x32xf32, #tpu.memory_space<vmem>>, vector<1x8x32xf32>
    %1 = vector.shape_cast %0 : vector<1x8x32xf32> to vector<8x32xf32>
    %c0_2 = arith.constant 0 : index
    %c0_3 = arith.constant 0 : index
    %c0_4 = arith.constant 0 : index
    %2 = vector.load %arg2[%c0_2, %c0_3, %c0_4] : memref<1x8x32xf32, #tpu.memory_space<vmem>>, vector<1x8x32xf32>
    %3 = vector.shape_cast %2 : vector<1x8x32xf32> to vector<8x32xf32>
    %c0_5 = arith.constant 0 : index
    %c0_6 = arith.constant 0 : index
    %c0_7 = arith.constant 0 : index
    %4 = vector.load %arg3[%c0_5, %c0_6, %c0_7] : memref<1x8x32xf32, #tpu.memory_space<vmem>>, vector<1x8x32xf32>
    %5 = vector.shape_cast %4 : vector<1x8x32xf32> to vector<8x32xf32>
    %c0_8 = arith.constant 0 : index
    %c0_9 = arith.constant 0 : index
    %6 = vector.load %arg4[%c0_8, %c0_9] : memref<32x32xf32, #tpu.memory_space<vmem>>, vector<32x32xf32>
    %cst = arith.constant dense<0.000000e+00> : vector<8x32xf32>
    %7 = tpu.matmul %1, %6, %cst {dimension_numbers = #tpu.dot_dimension_numbers<[1], [1], [0], [0], [0, 0, 1, 0], [], []>} : vector<8x32xf32>, vector<32x32xf32>, vector<8x32xf32> -> vector<8x32xf32>
    %c0_10 = arith.constant 0 : index
    %c0_11 = arith.constant 0 : index
    %8 = vector.load %arg8[%c0_10, %c0_11] : memref<1x32xf32, #tpu.memory_space<vmem>>, vector<1x32xf32>
    %9 = vector.broadcast %8 : vector<1x32xf32> to vector<8x32xf32>
    %10 = arith.addf %7, %9 : vector<8x32xf32>
    %c0_12 = arith.constant 0 : index
    %c0_13 = arith.constant 0 : index
    %11 = vector.load %arg5[%c0_12, %c0_13] : memref<32x32xf32, #tpu.memory_space<vmem>>, vector<32x32xf32>
    %cst_14 = arith.constant dense<0.000000e+00> : vector<8x32xf32>
    %12 = tpu.matmul %3, %11, %cst_14 {dimension_numbers = #tpu.dot_dimension_numbers<[1], [1], [0], [0], [0, 0, 1, 0], [], []>} : vector<8x32xf32>, vector<32x32xf32>, vector<8x32xf32> -> vector<8x32xf32>
    %c0_15 = arith.constant 0 : index
    %c0_16 = arith.constant 0 : index
    %13 = vector.load %arg9[%c0_15, %c0_16] : memref<1x32xf32, #tpu.memory_space<vmem>>, vector<1x32xf32>
    %14 = vector.broadcast %13 : vector<1x32xf32> to vector<8x32xf32>
    %15 = arith.addf %12, %14 : vector<8x32xf32>
    %c0_17 = arith.constant 0 : index
    %c0_18 = arith.constant 0 : index
    %16 = vector.load %arg6[%c0_17, %c0_18] : memref<32x32xf32, #tpu.memory_space<vmem>>, vector<32x32xf32>
    %cst_19 = arith.constant dense<0.000000e+00> : vector<8x32xf32>
    %17 = tpu.matmul %5, %16, %cst_19 {dimension_numbers = #tpu.dot_dimension_numbers<[1], [1], [0], [0], [0, 0, 1, 0], [], []>} : vector<8x32xf32>, vector<32x32xf32>, vector<8x32xf32> -> vector<8x32xf32>
    %c0_20 = arith.constant 0 : index
    %c0_21 = arith.constant 0 : index
    %18 = vector.load %arg10[%c0_20, %c0_21] : memref<1x32xf32, #tpu.memory_space<vmem>>, vector<1x32xf32>
    %19 = vector.broadcast %18 : vector<1x32xf32> to vector<8x32xf32>
    %20 = arith.addf %17, %19 : vector<8x32xf32>
    %21 = tpu.iota {dimensions = array<i32: 0>} : vector<8x8xi32>
    %22 = tpu.iota {dimensions = array<i32: 1>} : vector<8x8xi32>
    %23 = arith.cmpi sge, %21, %22 : vector<8x8xi32>
    %24 = vector.extract_strided_slice %10 {offsets = [0, 0], sizes = [8, 8], strides = [1, 1]} : vector<8x32xf32> to vector<8x8xf32>
    %25 = vector.extract_strided_slice %15 {offsets = [0, 0], sizes = [8, 8], strides = [1, 1]} : vector<8x32xf32> to vector<8x8xf32>
    %26 = vector.extract_strided_slice %20 {offsets = [0, 0], sizes = [8, 8], strides = [1, 1]} : vector<8x32xf32> to vector<8x8xf32>
    %cst_22 = arith.constant dense<0.000000e+00> : vector<8x8xf32>
    %27 = tpu.matmul %24, %25, %cst_22 {dimension_numbers = #tpu.dot_dimension_numbers<[1], [1], [0], [0], [0, 0, 1, 0], [], []>} : vector<8x8xf32>, vector<8x8xf32>, vector<8x8xf32> -> vector<8x8xf32>
    %cst_23 = arith.constant 0.353553385 : f32
    %28 = vector.broadcast %cst_23 : f32 to vector<8x8xf32>
    %29 = arith.mulf %27, %28 : vector<8x8xf32>
    %cst_24 = arith.constant 9.99999971E-10 : f32
    %30 = vector.broadcast %cst_24 : f32 to vector<8x8xf32>
    %31 = arith.select %23, %29, %30 : vector<8x8xi1>, vector<8x8xf32>
    %cst_25 = arith.constant dense<0xFF800000> : vector<8xf32>
    %32 = vector.multi_reduction <maximumf>, %31, %cst_25 [1] : vector<8x8xf32> to vector<8xf32>
    %33 = vector.shape_cast %32 : vector<8xf32> to vector<8x1xf32>
    %34 = vector.broadcast %33 : vector<8x1xf32> to vector<8x8xf32>
    %35 = arith.subf %31, %34 : vector<8x8xf32>
    %36 = math.exp %35 : vector<8x8xf32>
    %cst_26 = arith.constant dense<0.000000e+00> : vector<8xf32>
    %37 = vector.multi_reduction <add>, %36, %cst_26 [1] : vector<8x8xf32> to vector<8xf32>
    %38 = vector.shape_cast %37 : vector<8xf32> to vector<8x1xf32>
    %39 = tpu.reciprocal %38 : vector<8x1xf32> -> vector<8x1xf32>
    %40 = vector.broadcast %39 : vector<8x1xf32> to vector<8x8xf32>
    %41 = arith.mulf %36, %40 : vector<8x8xf32>
    %cst_27 = arith.constant dense<0.000000e+00> : vector<8x8xf32>
    %42 = tpu.matmul %41, %26, %cst_27 {dimension_numbers = #tpu.dot_dimension_numbers<[1], [0], [0], [1], [0, 0, 1, 1], [], []>} : vector<8x8xf32>, vector<8x8xf32>, vector<8x8xf32> -> vector<8x8xf32>
    %43 = vector.extract_strided_slice %10 {offsets = [0, 8], sizes = [8, 8], strides = [1, 1]} : vector<8x32xf32> to vector<8x8xf32>
    %44 = vector.extract_strided_slice %15 {offsets = [0, 8], sizes = [8, 8], strides = [1, 1]} : vector<8x32xf32> to vector<8x8xf32>
    %45 = vector.extract_strided_slice %20 {offsets = [0, 8], sizes = [8, 8], strides = [1, 1]} : vector<8x32xf32> to vector<8x8xf32>
    %cst_28 = arith.constant dense<0.000000e+00> : vector<8x8xf32>
    %46 = tpu.matmul %43, %44, %cst_28 {dimension_numbers = #tpu.dot_dimension_numbers<[1], [1], [0], [0], [0, 0, 1, 0], [], []>} : vector<8x8xf32>, vector<8x8xf32>, vector<8x8xf32> -> vector<8x8xf32>
    %cst_29 = arith.constant 0.353553385 : f32
    %47 = vector.broadcast %cst_29 : f32 to vector<8x8xf32>
    %48 = arith.mulf %46, %47 : vector<8x8xf32>
    %cst_30 = arith.constant 9.99999971E-10 : f32
    %49 = vector.broadcast %cst_30 : f32 to vector<8x8xf32>
    %50 = arith.select %23, %48, %49 : vector<8x8xi1>, vector<8x8xf32>
    %cst_31 = arith.constant dense<0xFF800000> : vector<8xf32>
    %51 = vector.multi_reduction <maximumf>, %50, %cst_31 [1] : vector<8x8xf32> to vector<8xf32>
    %52 = vector.shape_cast %51 : vector<8xf32> to vector<8x1xf32>
    %53 = vector.broadcast %52 : vector<8x1xf32> to vector<8x8xf32>
    %54 = arith.subf %50, %53 : vector<8x8xf32>
    %55 = math.exp %54 : vector<8x8xf32>
    %cst_32 = arith.constant dense<0.000000e+00> : vector<8xf32>
    %56 = vector.multi_reduction <add>, %55, %cst_32 [1] : vector<8x8xf32> to vector<8xf32>
    %57 = vector.shape_cast %56 : vector<8xf32> to vector<8x1xf32>
    %58 = tpu.reciprocal %57 : vector<8x1xf32> -> vector<8x1xf32>
    %59 = vector.broadcast %58 : vector<8x1xf32> to vector<8x8xf32>
    %60 = arith.mulf %55, %59 : vector<8x8xf32>
    %cst_33 = arith.constant dense<0.000000e+00> : vector<8x8xf32>
    %61 = tpu.matmul %60, %45, %cst_33 {dimension_numbers = #tpu.dot_dimension_numbers<[1], [0], [0], [1], [0, 0, 1, 1], [], []>} : vector<8x8xf32>, vector<8x8xf32>, vector<8x8xf32> -> vector<8x8xf32>
    %62 = vector.extract_strided_slice %10 {offsets = [0, 16], sizes = [8, 8], strides = [1, 1]} : vector<8x32xf32> to vector<8x8xf32>
    %63 = vector.extract_strided_slice %15 {offsets = [0, 16], sizes = [8, 8], strides = [1, 1]} : vector<8x32xf32> to vector<8x8xf32>
    %64 = vector.extract_strided_slice %20 {offsets = [0, 16], sizes = [8, 8], strides = [1, 1]} : vector<8x32xf32> to vector<8x8xf32>
    %cst_34 = arith.constant dense<0.000000e+00> : vector<8x8xf32>
    %65 = tpu.matmul %62, %63, %cst_34 {dimension_numbers = #tpu.dot_dimension_numbers<[1], [1], [0], [0], [0, 0, 1, 0], [], []>} : vector<8x8xf32>, vector<8x8xf32>, vector<8x8xf32> -> vector<8x8xf32>
    %cst_35 = arith.constant 0.353553385 : f32
    %66 = vector.broadcast %cst_35 : f32 to vector<8x8xf32>
    %67 = arith.mulf %65, %66 : vector<8x8xf32>
    %cst_36 = arith.constant 9.99999971E-10 : f32
    %68 = vector.broadcast %cst_36 : f32 to vector<8x8xf32>
    %69 = arith.select %23, %67, %68 : vector<8x8xi1>, vector<8x8xf32>
    %cst_37 = arith.constant dense<0xFF800000> : vector<8xf32>
    %70 = vector.multi_reduction <maximumf>, %69, %cst_37 [1] : vector<8x8xf32> to vector<8xf32>
    %71 = vector.shape_cast %70 : vector<8xf32> to vector<8x1xf32>
    %72 = vector.broadcast %71 : vector<8x1xf32> to vector<8x8xf32>
    %73 = arith.subf %69, %72 : vector<8x8xf32>
    %74 = math.exp %73 : vector<8x8xf32>
    %cst_38 = arith.constant dense<0.000000e+00> : vector<8xf32>
    %75 = vector.multi_reduction <add>, %74, %cst_38 [1] : vector<8x8xf32> to vector<8xf32>
    %76 = vector.shape_cast %75 : vector<8xf32> to vector<8x1xf32>
    %77 = tpu.reciprocal %76 : vector<8x1xf32> -> vector<8x1xf32>
    %78 = vector.broadcast %77 : vector<8x1xf32> to vector<8x8xf32>
    %79 = arith.mulf %74, %78 : vector<8x8xf32>
    %cst_39 = arith.constant dense<0.000000e+00> : vector<8x8xf32>
    %80 = tpu.matmul %79, %64, %cst_39 {dimension_numbers = #tpu.dot_dimension_numbers<[1], [0], [0], [1], [0, 0, 1, 1], [], []>} : vector<8x8xf32>, vector<8x8xf32>, vector<8x8xf32> -> vector<8x8xf32>
    %81 = vector.extract_strided_slice %10 {offsets = [0, 24], sizes = [8, 8], strides = [1, 1]} : vector<8x32xf32> to vector<8x8xf32>
    %82 = vector.extract_strided_slice %15 {offsets = [0, 24], sizes = [8, 8], strides = [1, 1]} : vector<8x32xf32> to vector<8x8xf32>
    %83 = vector.extract_strided_slice %20 {offsets = [0, 24], sizes = [8, 8], strides = [1, 1]} : vector<8x32xf32> to vector<8x8xf32>
    %cst_40 = arith.constant dense<0.000000e+00> : vector<8x8xf32>
    %84 = tpu.matmul %81, %82, %cst_40 {dimension_numbers = #tpu.dot_dimension_numbers<[1], [1], [0], [0], [0, 0, 1, 0], [], []>} : vector<8x8xf32>, vector<8x8xf32>, vector<8x8xf32> -> vector<8x8xf32>
    %cst_41 = arith.constant 0.353553385 : f32
    %85 = vector.broadcast %cst_41 : f32 to vector<8x8xf32>
    %86 = arith.mulf %84, %85 : vector<8x8xf32>
    %cst_42 = arith.constant 9.99999971E-10 : f32
    %87 = vector.broadcast %cst_42 : f32 to vector<8x8xf32>
    %88 = arith.select %23, %86, %87 : vector<8x8xi1>, vector<8x8xf32>
    %cst_43 = arith.constant dense<0xFF800000> : vector<8xf32>
    %89 = vector.multi_reduction <maximumf>, %88, %cst_43 [1] : vector<8x8xf32> to vector<8xf32>
    %90 = vector.shape_cast %89 : vector<8xf32> to vector<8x1xf32>
    %91 = vector.broadcast %90 : vector<8x1xf32> to vector<8x8xf32>
    %92 = arith.subf %88, %91 : vector<8x8xf32>
    %93 = math.exp %92 : vector<8x8xf32>
    %cst_44 = arith.constant dense<0.000000e+00> : vector<8xf32>
    %94 = vector.multi_reduction <add>, %93, %cst_44 [1] : vector<8x8xf32> to vector<8xf32>
    %95 = vector.shape_cast %94 : vector<8xf32> to vector<8x1xf32>
    %96 = tpu.reciprocal %95 : vector<8x1xf32> -> vector<8x1xf32>
    %97 = vector.broadcast %96 : vector<8x1xf32> to vector<8x8xf32>
    %98 = arith.mulf %93, %97 : vector<8x8xf32>
    %cst_45 = arith.constant dense<0.000000e+00> : vector<8x8xf32>
    %99 = tpu.matmul %98, %83, %cst_45 {dimension_numbers = #tpu.dot_dimension_numbers<[1], [0], [0], [1], [0, 0, 1, 1], [], []>} : vector<8x8xf32>, vector<8x8xf32>, vector<8x8xf32> -> vector<8x8xf32>
    %100 = tpu.concatenate %42, %61, %80, %99 in 1 : vector<8x8xf32>, vector<8x8xf32>, vector<8x8xf32>, vector<8x8xf32> -> vector<8x32xf32>
    %c0_46 = arith.constant 0 : index
    %c0_47 = arith.constant 0 : index
    %101 = vector.load %arg7[%c0_46, %c0_47] : memref<32x32xf32, #tpu.memory_space<vmem>>, vector<32x32xf32>
    %cst_48 = arith.constant dense<0.000000e+00> : vector<8x32xf32>
    %102 = tpu.matmul %100, %101, %cst_48 {dimension_numbers = #tpu.dot_dimension_numbers<[1], [1], [0], [0], [0, 0, 1, 0], [], []>} : vector<8x32xf32>, vector<32x32xf32>, vector<8x32xf32> -> vector<8x32xf32>
    %c0_49 = arith.constant 0 : index
    %c0_50 = arith.constant 0 : index
    %103 = vector.load %arg11[%c0_49, %c0_50] : memref<1x32xf32, #tpu.memory_space<vmem>>, vector<1x32xf32>
    %104 = vector.broadcast %103 : vector<1x32xf32> to vector<8x32xf32>
    %105 = arith.addf %102, %104 : vector<8x32xf32>
    %c0_51 = arith.constant 0 : index
    %c0_52 = arith.constant 0 : index
    %c0_53 = arith.constant 0 : index
    %106 = vector.load %arg12[%c0_51, %c0_52, %c0_53] : memref<1x8x32xf32, #tpu.memory_space<vmem>>, vector<1x8x32xf32>
    %107 = vector.shape_cast %106 : vector<1x8x32xf32> to vector<8x32xf32>
    %108 = vector.shape_cast %105 : vector<8x32xf32> to vector<1x8x32xf32>
    tpu.vector_store %arg12[%c0_51, %c0_52, %c0_53], %108 {strides = array<i32>} : memref<1x8x32xf32, #tpu.memory_space<vmem>>, vector<1x8x32xf32>,
    return
  }
  func.func @transform_0(%arg0: i32) -> (i32, i32, i32) {
    %c0_i32 = arith.constant 0 : i32
    %c0_i32_0 = arith.constant 0 : i32
    %c0_i32_1 = arith.constant 0 : i32
    return %arg0, %c0_i32, %c0_i32_0 : i32, i32, i32
  }
  func.func @transform_1(%arg0: i32) -> (i32, i32, i32) {
    %c0_i32 = arith.constant 0 : i32
    %c0_i32_0 = arith.constant 0 : i32
    %c0_i32_1 = arith.constant 0 : i32
    return %arg0, %c0_i32, %c0_i32_0 : i32, i32, i32
  }
  func.func @transform_2(%arg0: i32) -> (i32, i32, i32) {
    %c0_i32 = arith.constant 0 : i32
    %c0_i32_0 = arith.constant 0 : i32
    %c0_i32_1 = arith.constant 0 : i32
    return %arg0, %c0_i32, %c0_i32_0 : i32, i32, i32
  }
  func.func @transform_3(%arg0: i32) -> (i32, i32) {
    %c0_i32 = arith.constant 0 : i32
    %c0_i32_0 = arith.constant 0 : i32
    %c0_i32_1 = arith.constant 0 : i32
    return %c0_i32, %c0_i32_0 : i32, i32
  }
  func.func @transform_4(%arg0: i32) -> (i32, i32) {
    %c0_i32 = arith.constant 0 : i32
    %c0_i32_0 = arith.constant 0 : i32
    %c0_i32_1 = arith.constant 0 : i32
    return %c0_i32, %c0_i32_0 : i32, i32
  }
  func.func @transform_5(%arg0: i32) -> (i32, i32) {
    %c0_i32 = arith.constant 0 : i32
    %c0_i32_0 = arith.constant 0 : i32
    %c0_i32_1 = arith.constant 0 : i32
    return %c0_i32, %c0_i32_0 : i32, i32
  }
  func.func @transform_6(%arg0: i32) -> (i32, i32) {
    %c0_i32 = arith.constant 0 : i32
    %c0_i32_0 = arith.constant 0 : i32
    %c0_i32_1 = arith.constant 0 : i32
    return %c0_i32, %c0_i32_0 : i32, i32
  }
  func.func @transform_7(%arg0: i32) -> (i32, i32) {
    %c0_i32 = arith.constant 0 : i32
    %c0_i32_0 = arith.constant 0 : i32
    %c0_i32_1 = arith.constant 0 : i32
    return %c0_i32, %c0_i32_0 : i32, i32
  }
  func.func @transform_8(%arg0: i32) -> (i32, i32) {
    %c0_i32 = arith.constant 0 : i32
    %c0_i32_0 = arith.constant 0 : i32
    %c0_i32_1 = arith.constant 0 : i32
    return %c0_i32, %c0_i32_0 : i32, i32
  }
  func.func @transform_9(%arg0: i32) -> (i32, i32) {
    %c0_i32 = arith.constant 0 : i32
    %c0_i32_0 = arith.constant 0 : i32
    %c0_i32_1 = arith.constant 0 : i32
    return %c0_i32, %c0_i32_0 : i32, i32
  }
  func.func @transform_10(%arg0: i32) -> (i32, i32) {
    %c0_i32 = arith.constant 0 : i32
    %c0_i32_0 = arith.constant 0 : i32
    %c0_i32_1 = arith.constant 0 : i32
    return %c0_i32, %c0_i32_0 : i32, i32
  }
  func.func @transform_11(%arg0: i32) -> (i32, i32, i32) {
    %c0_i32 = arith.constant 0 : i32
    %c0_i32_0 = arith.constant 0 : i32
    %c0_i32_1 = arith.constant 0 : i32
    return %arg0, %c0_i32, %c0_i32_0 : i32, i32, i32
  }
}

</mosaic_0001>

<llo_original>
// kernel: tpu_custom_call.1
$region0: #{tpu_custom_call.1}
  #allocation0 [shape = 'u32[]', space=smem, size = 0x4, offset = 0x4, fixed_abs, tag = 'smem constant byte address 0x4 - core index']
  #allocation1 [shape = 'u32[144,128]{1,0:T(1,128)}', space=vmem, size = 0x12000, scoped, tag = 'internal scratch']
  %s0 = inlined_call_operand.hbm [shape: f32[2,8,32], index: 0, kind: input, shape index: {}]
  %s1 = inlined_call_operand.hbm [shape: f32[2,8,32], index: 1, kind: input, shape index: {}]
  %s2 = inlined_call_operand.hbm [shape: f32[2,8,32], index: 2, kind: input, shape index: {}]
  %s3 = inlined_call_operand.hbm [shape: f32[32,32], index: 3, kind: input, shape index: {}]
  %s4 = inlined_call_operand.hbm [shape: f32[32,32], index: 4, kind: input, shape index: {}]
  %s5 = inlined_call_operand.hbm [shape: f32[32,32], index: 5, kind: input, shape index: {}]
  %s6 = inlined_call_operand.hbm [shape: f32[32,32], index: 6, kind: input, shape index: {}]
  %s7 = inlined_call_operand.vmem [shape: f32[1,32], index: 7, kind: input, shape index: {}]
  %s8 = inlined_call_operand.vmem [shape: f32[1,32], index: 8, kind: input, shape index: {}]
  %s9 = inlined_call_operand.vmem [shape: f32[1,32], index: 9, kind: input, shape index: {}]
  %s10 = inlined_call_operand.vmem [shape: f32[1,32], index: 10, kind: input, shape index: {}]
  %s11 = inlined_call_operand.hbm [shape: f32[2,8,32], index: 11, kind: output, shape index: {}]
  %s12 = sld [smem:[#allocation0]]
  $region105: #{tpu_custom_call.1} parent=0
    _
  %s14 = ssub.s32 1, %s12
  %s15 = scalar_select 0, %s14, %s12
  $region1: #{tpu_custom_call.1} parent=0
    #allocation2 [shape = 'u8[8192]{0}', space=vmem, size = 0x2000, scoped, tag = 'input window, operand 0']
    #allocation3 [shape = 's32[2]{0}', space=sflag, size = 0x8, scoped, tag = 'scoped memory for tpu_custom_call.1']
    #allocation4 [shape = 's32[2]{0}', space=sflag, size = 0x8, scoped, tag = 'scoped memory for tpu_custom_call.1']
    #allocation5 [shape = 'u8[8192]{0}', space=vmem, size = 0x2000, scoped, tag = 'input window, operand 1']
    #allocation6 [shape = 's32[2]{0}', space=sflag, size = 0x8, scoped, tag = 'scoped memory for tpu_custom_call.1']
    #allocation7 [shape = 'u8[8192]{0}', space=vmem, size = 0x2000, scoped, tag = 'input window, operand 2']
    #allocation8 [shape = 'u8[16384]{0}', space=vmem, size = 0x4000, scoped, tag = 'input window, operand 3, single buffered']
    #allocation9 [shape = 's32[1]{0}', space=sflag, size = 0x4, scoped, tag = 'scoped memory for tpu_custom_call.1']
    #allocation10 [shape = 'u8[16384]{0}', space=vmem, size = 0x4000, scoped, tag = 'input window, operand 4, single buffered']
    #allocation11 [shape = 'u8[16384]{0}', space=vmem, size = 0x4000, scoped, tag = 'input window, operand 5, single buffered']
    #allocation12 [shape = 's32[1]{0}', space=sflag, size = 0x4, scoped, tag = 'scoped memory for tpu_custom_call.1']
    #allocation13 [shape = 'u8[16384]{0}', space=vmem, size = 0x4000, scoped, tag = 'input window, operand 6, single buffered']
    #allocation14 [shape = 'u8[8192]{0}', space=vmem, size = 0x2000, scoped, tag = 'output window, operand 0']
    %16 = vsyncpa [#allocation3], 0
    %s17 = scalar_lea.sflag [#allocation3], 1
    %18 = vsyncpa %s17, 0
    %19 = vsyncpa [#allocation6], 0
    %s20 = scalar_lea.sflag [#allocation6], 1
    %21 = vsyncpa %s20, 0
    %22 = vsyncpa [#allocation9], 0
    %23 = vsyncpa [#allocation12], 0
    %24 = vsyncpa [#allocation4], 0
    %s25 = scalar_lea.sflag [#allocation4], 1
    %26 = vsyncpa %s25, 0
    loop: start=0, step=1, limit=4
    $region2: #{tpu_custom_call.1} parent=1 // loop_pre_header
      _
    $region3: #{tpu_custom_call.1} parent=1 // loop_header
      %s28 = sphi 0, %s32
      %p29 = scmp.ge.s32.totalorder %s28, 4
      %s38 = sphi 0, %s40
      %s41 = sphi 0, %s38
      %s42 = sphi 0, %s41
      %s58 = sphi 0, %s42
      %s64 = sphi 0, %s66
      %s67 = sphi 0, %s64
      %s68 = sphi 0, %s67
      %s84 = sphi 0, %s68
      %s90 = sphi 0, %s92
      %s93 = sphi 0, %s90
      %s94 = sphi 0, %s93
      %s110 = sphi 0, %s94
      %s114 = sphi 0, %s114
      %s116 = sphi 0, %s114
      %s117 = sphi 0, %s116
      %s131 = sphi 0, %s117
      %s135 = sphi 0, %s135
      %s137 = sphi 0, %s135
      %s138 = sphi 0, %s137
      %s152 = sphi 0, %s138
      %s156 = sphi 0, %s156
      %s158 = sphi 0, %s156
      %s159 = sphi 0, %s158
      %s173 = sphi 0, %s159
      %s177 = sphi 0, %s177
      %s179 = sphi 0, %s177
      %s180 = sphi 0, %s179
      %s194 = sphi 0, %s180
      %s198 = sphi 0, %s198
      %s200 = sphi 0, %s198
      %s201 = sphi 0, %s200
      %s215 = sphi 0, %s201
      %s219 = sphi 0, %s219
      %s221 = sphi 0, %s219
      %s222 = sphi 0, %s221
      %s236 = sphi 0, %s222
      %s240 = sphi 0, %s240
      %s242 = sphi 0, %s240
      %s243 = sphi 0, %s242
      %s257 = sphi 0, %s243
      %s261 = sphi 0, %s261
      %s263 = sphi 0, %s261
      %s264 = sphi 0, %s263
      %s278 = sphi 0, %s264
      %s284 = sphi 0, %s286
      %s287 = sphi 0, %s284
      %s288 = sphi 0, %s287
      %s304 = sphi 0, %s288
    $region4: #{tpu_custom_call.1} parent=1 // loop_header_branch
      %31 = sbr.rel (%p29) target = $region8
    $region5: #{tpu_custom_call.1} parent=1 // loop_body
      %s33 = ssub.s32 %s28, 1
      %s34 = ssub.s32 %s28, 2
      %s35 = sadd.s32 %s28, 1
      %s36 = ssub.s32 %s28, %s35
      %p37 = scmp.eq.s32.totalorder %s36, 0
      %s39 = sadd.s32 %s38, 1
      %s40 = scalar_select %p37, %s38, %s39
      %p43 = pneg %p37
      %p44 = scmp.eq.s32.totalorder %s28, 1
      %p45 = por %p43, %p44
      %p46 = scmp.ne.s32.totalorder %s38, %s41
      %p47 = scmp.eq.s32.totalorder %s28, 0
      %p48 = por %p46, %p47
      %p49 = scmp.ne.s32.totalorder %s38, %s41
      %p50 = scmp.eq.s32.totalorder %s33, 1
      %p51 = por %p49, %p50
      %p52 = scmp.ne.s32.totalorder %s41, %s42
      %p53 = scmp.eq.s32.totalorder %s33, 0
      %p54 = por %p52, %p53
      %p55 = scmp.ne.s32.totalorder %s41, %s42
      %p56 = scmp.eq.s32.totalorder %s34, 1
      %p57 = por %p55, %p56
      %p59 = scmp.ne.s32.totalorder %s42, %s58
      %p60 = scmp.eq.s32.totalorder %s34, 0
      %p61 = por %p59, %p60
      %s62 = ssub.s32 %s28, %s35
      %p63 = scmp.eq.s32.totalorder %s62, 0
      %s65 = sadd.s32 %s64, 1
      %s66 = scalar_select %p63, %s64, %s65
      %p69 = pneg %p63
      %p70 = scmp.eq.s32.totalorder %s28, 1
      %p71 = por %p69, %p70
      %p72 = scmp.ne.s32.totalorder %s64, %s67
      %p73 = scmp.eq.s32.totalorder %s28, 0
      %p74 = por %p72, %p73
      %p75 = scmp.ne.s32.totalorder %s64, %s67
      %p76 = scmp.eq.s32.totalorder %s33, 1
      %p77 = por %p75, %p76
      %p78 = scmp.ne.s32.totalorder %s67, %s68
      %p79 = scmp.eq.s32.totalorder %s33, 0
      %p80 = por %p78, %p79
      %p81 = scmp.ne.s32.totalorder %s67, %s68
      %p82 = scmp.eq.s32.totalorder %s34, 1
      %p83 = por %p81, %p82
      %p85 = scmp.ne.s32.totalorder %s68, %s84
      %p86 = scmp.eq.s32.totalorder %s34, 0
      %p87 = por %p85, %p86
      %s88 = ssub.s32 %s28, %s35
      %p89 = scmp.eq.s32.totalorder %s88, 0
      %s91 = sadd.s32 %s90, 1
      %s92 = scalar_select %p89, %s90, %s91
      %p95 = pneg %p89
      %p96 = scmp.eq.s32.totalorder %s28, 1
      %p97 = por %p95, %p96
      %p98 = scmp.ne.s32.totalorder %s90, %s93
      %p99 = scmp.eq.s32.totalorder %s28, 0
      %p100 = por %p98, %p99
      %p101 = scmp.ne.s32.totalorder %s90, %s93
      %p102 = scmp.eq.s32.totalorder %s33, 1
      %p103 = por %p101, %p102
      %p104 = scmp.ne.s32.totalorder %s93, %s94
      %p105 = scmp.eq.s32.totalorder %s33, 0
      %p106 = por %p104, %p105
      %p107 = scmp.ne.s32.totalorder %s93, %s94
      %p108 = scmp.eq.s32.totalorder %s34, 1
      %p109 = por %p107, %p108
      %p111 = scmp.ne.s32.totalorder %s94, %s110
      %p112 = scmp.eq.s32.totalorder %s34, 0
      %p113 = por %p111, %p112
      %s115 = sadd.s32 %s114, 1
      %p118 = scmp.eq.s32.totalorder %s28, 1
      %p119 = scmp.ne.s32.totalorder %s114, %s116
      %p120 = scmp.eq.s32.totalorder %s28, 0
      %p121 = por %p119, %p120
      %p122 = scmp.ne.s32.totalorder %s114, %s116
      %p123 = scmp.eq.s32.totalorder %s33, 1
      %p124 = por %p122, %p123
      %p125 = scmp.ne.s32.totalorder %s116, %s117
      %p126 = scmp.eq.s32.totalorder %s33, 0
      %p127 = por %p125, %p126
      %p128 = scmp.ne.s32.totalorder %s116, %s117
      %p129 = scmp.eq.s32.totalorder %s34, 1
      %p130 = por %p128, %p129
      %p132 = scmp.ne.s32.totalorder %s117, %s131
      %p133 = scmp.eq.s32.totalorder %s34, 0
      %p134 = por %p132, %p133
      %s136 = sadd.s32 %s135, 1
      %p139 = scmp.eq.s32.totalorder %s28, 1
      %p140 = scmp.ne.s32.totalorder %s135, %s137
      %p141 = scmp.eq.s32.totalorder %s28, 0
      %p142 = por %p140, %p141
      %p143 = scmp.ne.s32.totalorder %s135, %s137
      %p144 = scmp.eq.s32.totalorder %s33, 1
      %p145 = por %p143, %p144
      %p146 = scmp.ne.s32.totalorder %s137, %s138
      %p147 = scmp.eq.s32.totalorder %s33, 0
      %p148 = por %p146, %p147
      %p149 = scmp.ne.s32.totalorder %s137, %s138
      %p150 = scmp.eq.s32.totalorder %s34, 1
      %p151 = por %p149, %p150
      %p153 = scmp.ne.s32.totalorder %s138, %s152
      %p154 = scmp.eq.s32.totalorder %s34, 0
      %p155 = por %p153, %p154
      %s157 = sadd.s32 %s156, 1
      %p160 = scmp.eq.s32.totalorder %s28, 1
      %p161 = scmp.ne.s32.totalorder %s156, %s158
      %p162 = scmp.eq.s32.totalorder %s28, 0
      %p163 = por %p161, %p162
      %p164 = scmp.ne.s32.totalorder %s156, %s158
      %p165 = scmp.eq.s32.totalorder %s33, 1
      %p166 = por %p164, %p165
      %p167 = scmp.ne.s32.totalorder %s158, %s159
      %p168 = scmp.eq.s32.totalorder %s33, 0
      %p169 = por %p167, %p168
      %p170 = scmp.ne.s32.totalorder %s158, %s159
      %p171 = scmp.eq.s32.totalorder %s34, 1
      %p172 = por %p170, %p171
      %p174 = scmp.ne.s32.totalorder %s159, %s173
      %p175 = scmp.eq.s32.totalorder %s34, 0
      %p176 = por %p174, %p175
      %s178 = sadd.s32 %s177, 1
      %p181 = scmp.eq.s32.totalorder %s28, 1
      %p182 = scmp.ne.s32.totalorder %s177, %s179
      %p183 = scmp.eq.s32.totalorder %s28, 0
      %p184 = por %p182, %p183
      %p185 = scmp.ne.s32.totalorder %s177, %s179
      %p186 = scmp.eq.s32.totalorder %s33, 1
      %p187 = por %p185, %p186
      %p188 = scmp.ne.s32.totalorder %s179, %s180
      %p189 = scmp.eq.s32.totalorder %s33, 0
      %p190 = por %p188, %p189
      %p191 = scmp.ne.s32.totalorder %s179, %s180
      %p192 = scmp.eq.s32.totalorder %s34, 1
      %p193 = por %p191, %p192
      %p195 = scmp.ne.s32.totalorder %s180, %s194
      %p196 = scmp.eq.s32.totalorder %s34, 0
      %p197 = por %p195, %p196
      %s199 = sadd.s32 %s198, 1
      %p202 = scmp.eq.s32.totalorder %s28, 1
      %p203 = scmp.ne.s32.totalorder %s198, %s200
      %p204 = scmp.eq.s32.totalorder %s28, 0
      %p205 = por %p203, %p204
      %p206 = scmp.ne.s32.totalorder %s198, %s200
      %p207 = scmp.eq.s32.totalorder %s33, 1
      %p208 = por %p206, %p207
      %p209 = scmp.ne.s32.totalorder %s200, %s201
      %p210 = scmp.eq.s32.totalorder %s33, 0
      %p211 = por %p209, %p210
      %p212 = scmp.ne.s32.totalorder %s200, %s201
      %p213 = scmp.eq.s32.totalorder %s34, 1
      %p214 = por %p212, %p213
      %p216 = scmp.ne.s32.totalorder %s201, %s215
      %p217 = scmp.eq.s32.totalorder %s34, 0
      %p218 = por %p216, %p217
      %s220 = sadd.s32 %s219, 1
      %p223 = scmp.eq.s32.totalorder %s28, 1
      %p224 = scmp.ne.s32.totalorder %s219, %s221
      %p225 = scmp.eq.s32.totalorder %s28, 0
      %p226 = por %p224, %p225
      %p227 = scmp.ne.s32.totalorder %s219, %s221
      %p228 = scmp.eq.s32.totalorder %s33, 1
      %p229 = por %p227, %p228
      %p230 = scmp.ne.s32.totalorder %s221, %s222
      %p231 = scmp.eq.s32.totalorder %s33, 0
      %p232 = por %p230, %p231
      %p233 = scmp.ne.s32.totalorder %s221, %s222
      %p234 = scmp.eq.s32.totalorder %s34, 1
      %p235 = por %p233, %p234
      %p237 = scmp.ne.s32.totalorder %s222, %s236
      %p238 = scmp.eq.s32.totalorder %s34, 0
      %p239 = por %p237, %p238
      %s241 = sadd.s32 %s240, 1
      %p244 = scmp.eq.s32.totalorder %s28, 1
      %p245 = scmp.ne.s32.totalorder %s240, %s242
      %p246 = scmp.eq.s32.totalorder %s28, 0
      %p247 = por %p245, %p246
      %p248 = scmp.ne.s32.totalorder %s240, %s242
      %p249 = scmp.eq.s32.totalorder %s33, 1
      %p250 = por %p248, %p249
      %p251 = scmp.ne.s32.totalorder %s242, %s243
      %p252 = scmp.eq.s32.totalorder %s33, 0
      %p253 = por %p251, %p252
      %p254 = scmp.ne.s32.totalorder %s242, %s243
      %p255 = scmp.eq.s32.totalorder %s34, 1
      %p256 = por %p254, %p255
      %p258 = scmp.ne.s32.totalorder %s243, %s257
      %p259 = scmp.eq.s32.totalorder %s34, 0
      %p260 = por %p258, %p259
      %s262 = sadd.s32 %s261, 1
      %p265 = scmp.eq.s32.totalorder %s28, 1
      %p266 = scmp.ne.s32.totalorder %s261, %s263
      %p267 = scmp.eq.s32.totalorder %s28, 0
      %p268 = por %p266, %p267
      %p269 = scmp.ne.s32.totalorder %s261, %s263
      %p270 = scmp.eq.s32.totalorder %s33, 1
      %p271 = por %p269, %p270
      %p272 = scmp.ne.s32.totalorder %s263, %s264
      %p273 = scmp.eq.s32.totalorder %s33, 0
      %p274 = por %p272, %p273
      %p275 = scmp.ne.s32.totalorder %s263, %s264
      %p276 = scmp.eq.s32.totalorder %s34, 1
      %p277 = por %p275, %p276
      %p279 = scmp.ne.s32.totalorder %s264, %s278
      %p280 = scmp.eq.s32.totalorder %s34, 0
      %p281 = por %p279, %p280
      %s282 = ssub.s32 %s28, %s35
      %p283 = scmp.eq.s32.totalorder %s282, 0
      %s285 = sadd.s32 %s284, 1
      %s286 = scalar_select %p283, %s284, %s285
      %p289 = pneg %p283
      %p290 = scmp.eq.s32.totalorder %s28, 1
      %p291 = por %p289, %p290
      %p292 = scmp.ne.s32.totalorder %s284, %s287
      %p293 = scmp.eq.s32.totalorder %s28, 0
      %p294 = por %p292, %p293
      %p295 = scmp.ne.s32.totalorder %s284, %s287
      %p296 = scmp.eq.s32.totalorder %s33, 1
      %p297 = por %p295, %p296
      %p298 = scmp.ne.s32.totalorder %s287, %s288
      %p299 = scmp.eq.s32.totalorder %s33, 0
      %p300 = por %p298, %p299
      %p301 = scmp.ne.s32.totalorder %s287, %s288
      %p302 = scmp.eq.s32.totalorder %s34, 1
      %p303 = por %p301, %p302
      %p305 = scmp.ne.s32.totalorder %s288, %s304
      %p306 = scmp.eq.s32.totalorder %s34, 0
      %p307 = por %p305, %p306
      %p308 = scmp.le.s32.totalorder 1, %s28
      %p309 = scmp.lt.s32.totalorder %s28, 3
      %p310 = pnand %p308, %p309
      %p311 = pneg %p310
      // Predicated region
      $region9: #{tpu_custom_call.1} parent=5 // pred_check
        _
      $region10: #{tpu_custom_call.1} parent=5 // pred_check_branch
        %313 = sbr.rel (%p310) target = $region12
      $region11: #{tpu_custom_call.1} parent=5 // pred_region
        %s314 = ssub.s32 %s28, 1
        // Predicated region
        $region13: #{tpu_custom_call.1} parent=11 // pred_check
          %p315 = pneg %p127
        $region14: #{tpu_custom_call.1} parent=11 // pred_check_branch
          %317 = sbr.rel (%p315) target = $region16
        $region15: #{tpu_custom_call.1} parent=11 // pred_region
          %s319 = ssub.s32 512, 512
          %320 = vsyncadd [#allocation9], %s319
          %s321 = sshll.u32 [#allocation8], 4
          %s322 = int_to_ptr.vmem [resolvable:$true] %s321
          %327 = dma.hbm_to_vmem [thread:$0]  %s3, 512, %s322, [#allocation9], 128, 128, 8
        $region16: #{tpu_custom_call.1} parent=11 // pred_fallthru
          _
        // Predicated region
        $region17: #{tpu_custom_call.1} parent=11 // pred_check
          %p328 = pneg %p148
        $region18: #{tpu_custom_call.1} parent=11 // pred_check_branch
          %330 = sbr.rel (%p328) target = $region20
        $region19: #{tpu_custom_call.1} parent=11 // pred_region
          %s332 = ssub.s32 512, 512
          %333 = vsyncadd [#allocation9], %s332
          %s334 = sshll.u32 [#allocation10], 4
          %s335 = int_to_ptr.vmem [resolvable:$true] %s334
          %340 = dma.hbm_to_vmem [thread:$0]  %s4, 512, %s335, [#allocation9], 128, 128, 8
        $region20: #{tpu_custom_call.1} parent=11 // pred_fallthru
          _
        // Predicated region
        $region21: #{tpu_custom_call.1} parent=11 // pred_check
          %p341 = pneg %p169
        $region22: #{tpu_custom_call.1} parent=11 // pred_check_branch
          %343 = sbr.rel (%p341) target = $region24
        $region23: #{tpu_custom_call.1} parent=11 // pred_region
          %s345 = ssub.s32 512, 512
          %346 = vsyncadd [#allocation12], %s345
          %s347 = sshll.u32 [#allocation11], 4
          %s348 = int_to_ptr.vmem [resolvable:$true] %s347
          %353 = dma.hbm_to_vmem [thread:$0]  %s5, 512, %s348, [#allocation12], 128, 128, 8
        $region24: #{tpu_custom_call.1} parent=11 // pred_fallthru
          _
        // Predicated region
        $region25: #{tpu_custom_call.1} parent=11 // pred_check
          %p354 = pneg %p190
        $region26: #{tpu_custom_call.1} parent=11 // pred_check_branch
          %356 = sbr.rel (%p354) target = $region28
        $region27: #{tpu_custom_call.1} parent=11 // pred_region
          %s358 = ssub.s32 512, 512
          %359 = vsyncadd [#allocation12], %s358
          %s360 = sshll.u32 [#allocation13], 4
          %s361 = int_to_ptr.vmem [resolvable:$true] %s360
          %366 = dma.hbm_to_vmem [thread:$0]  %s6, 512, %s361, [#allocation12], 128, 128, 8
        $region28: #{tpu_custom_call.1} parent=11 // pred_fallthru
          _
        // Predicated region
        $region29: #{tpu_custom_call.1} parent=11 // pred_check
          %p367 = pneg %p211
        $region30: #{tpu_custom_call.1} parent=11 // pred_check_branch
          %369 = sbr.rel (%p367) target = $region32
        $region31: #{tpu_custom_call.1} parent=11 // pred_region
          _
        $region32: #{tpu_custom_call.1} parent=11 // pred_fallthru
          _
        // Predicated region
        $region33: #{tpu_custom_call.1} parent=11 // pred_check
          %p370 = pneg %p232
        $region34: #{tpu_custom_call.1} parent=11 // pred_check_branch
          %372 = sbr.rel (%p370) target = $region36
        $region35: #{tpu_custom_call.1} parent=11 // pred_region
          _
        $region36: #{tpu_custom_call.1} parent=11 // pred_fallthru
          _
        // Predicated region
        $region37: #{tpu_custom_call.1} parent=11 // pred_check
          %p373 = pneg %p253
        $region38: #{tpu_custom_call.1} parent=11 // pred_check_branch
          %375 = sbr.rel (%p373) target = $region40
        $region39: #{tpu_custom_call.1} parent=11 // pred_region
          _
        $region40: #{tpu_custom_call.1} parent=11 // pred_fallthru
          _
        // Predicated region
        $region41: #{tpu_custom_call.1} parent=11 // pred_check
          %p376 = pneg %p274
        $region42: #{tpu_custom_call.1} parent=11 // pred_check_branch
          %378 = sbr.rel (%p376) target = $region44
        $region43: #{tpu_custom_call.1} parent=11 // pred_region
          _
        $region44: #{tpu_custom_call.1} parent=11 // pred_fallthru
          _
      $region12: #{tpu_custom_call.1} parent=5 // pred_fallthru
        _
      %p379 = scmp.lt.s32.totalorder %s28, 2
      // Predicated region
      $region45: #{tpu_custom_call.1} parent=5 // pred_check
        %p380 = pneg %p379
      $region46: #{tpu_custom_call.1} parent=5 // pred_check_branch
        %382 = sbr.rel (%p380) target = $region48
      $region47: #{tpu_custom_call.1} parent=5 // pred_region
        // Predicated region
        $region49: #{tpu_custom_call.1} parent=47 // pred_check
          %p383 = pneg %p48
        $region50: #{tpu_custom_call.1} parent=47 // pred_check_branch
          %385 = sbr.rel (%p383) target = $region52
        $region51: #{tpu_custom_call.1} parent=47 // pred_region
          %s386 = sand.u32 %s38, 1
          %s387 = scalar_lea.sflag [#allocation3], %s386
          %s388 = sand.u32 %s38, 1
          %s389 = smul.addr %s388, 8
          %s390 = scalar_lea.vmem [#allocation2], %s389
          %s392 = ssub.s32 128, 128
          %393 = vsyncadd %s387, %s392
          %s394 = smul.addr %s28, 128
          %s395 = scalar_lea.hbm %s0, %s394
          %s397 = sshll.u32 %s390, 4
          %s398 = int_to_ptr.vmem [resolvable:$true] %s397
          %400 = dma.hbm_to_vmem [thread:$0]  %s395, 128, %s398, %s387
        $region52: #{tpu_custom_call.1} parent=47 // pred_fallthru
          _
        // Predicated region
        $region53: #{tpu_custom_call.1} parent=47 // pred_check
          %p401 = pneg %p74
        $region54: #{tpu_custom_call.1} parent=47 // pred_check_branch
          %403 = sbr.rel (%p401) target = $region56
        $region55: #{tpu_custom_call.1} parent=47 // pred_region
          %s404 = sand.u32 %s28, 1
          %s405 = scalar_lea.sflag [#allocation6], %s404
          %s406 = sand.u32 %s64, 1
          %s407 = smul.addr %s406, 8
          %s408 = scalar_lea.vmem [#allocation5], %s407
          %s410 = ssub.s32 128, 128
          %411 = vsyncadd %s405, %s410
          %s412 = smul.addr %s28, 128
          %s413 = scalar_lea.hbm %s1, %s412
          %s415 = sshll.u32 %s408, 4
          %s416 = int_to_ptr.vmem [resolvable:$true] %s415
          %418 = dma.hbm_to_vmem [thread:$0]  %s413, 128, %s416, %s405
        $region56: #{tpu_custom_call.1} parent=47 // pred_fallthru
          _
        // Predicated region
        $region57: #{tpu_custom_call.1} parent=47 // pred_check
          %p419 = pneg %p100
        $region58: #{tpu_custom_call.1} parent=47 // pred_check_branch
          %421 = sbr.rel (%p419) target = $region60
        $region59: #{tpu_custom_call.1} parent=47 // pred_region
          %s422 = sand.u32 %s28, 1
          %s423 = scalar_lea.sflag [#allocation6], %s422
          %s424 = sand.u32 %s90, 1
          %s425 = smul.addr %s424, 8
          %s426 = scalar_lea.vmem [#allocation7], %s425
          %s428 = ssub.s32 128, 128
          %429 = vsyncadd %s423, %s428
          %s430 = smul.addr %s28, 128
          %s431 = scalar_lea.hbm %s2, %s430
          %s433 = sshll.u32 %s426, 4
          %s434 = int_to_ptr.vmem [resolvable:$true] %s433
          %436 = dma.hbm_to_vmem [thread:$0]  %s431, 128, %s434, %s423
        $region60: #{tpu_custom_call.1} parent=47 // pred_fallthru
          _
      $region48: #{tpu_custom_call.1} parent=5 // pred_fallthru
        _
      %p437 = scmp.le.s32.totalorder 1, %s28
      %p438 = scmp.lt.s32.totalorder %s28, 3
      %p439 = pnand %p437, %p438
      %p440 = pneg %p439
      // Predicated region
      $region61: #{tpu_custom_call.1} parent=5 // pred_check
        _
      $region62: #{tpu_custom_call.1} parent=5 // pred_check_branch
        %442 = sbr.rel (%p439) target = $region64
      $region63: #{tpu_custom_call.1} parent=5 // pred_region
        %s443 = ssub.s32 %s28, 1
        %s444 = sand.u32 %s41, 1
        %s445 = scalar_lea.sflag [#allocation3], %s444
        %s446 = sand.u32 %s41, 1
        %s447 = smul.addr %s446, 8
        %s448 = scalar_lea.vmem [#allocation2], %s447
        // Predicated region
        $region65: #{tpu_custom_call.1} parent=63 // pred_check
          %p449 = pneg %p54
        $region66: #{tpu_custom_call.1} parent=63 // pred_check_branch
          %451 = sbr.rel (%p449) target = $region68
        $region67: #{tpu_custom_call.1} parent=63 // pred_region
          %452 = dma.done %s445, 128
        $region68: #{tpu_custom_call.1} parent=63 // pred_fallthru
          _
        %s453 = sand.u32 %s33, 1
        %s454 = scalar_lea.sflag [#allocation6], %s453
        %s455 = sand.u32 %s67, 1
        %s456 = smul.addr %s455, 8
        %s457 = scalar_lea.vmem [#allocation5], %s456
        // Predicated region
        $region69: #{tpu_custom_call.1} parent=63 // pred_check
          %p458 = pneg %p80
        $region70: #{tpu_custom_call.1} parent=63 // pred_check_branch
          %460 = sbr.rel (%p458) target = $region72
        $region71: #{tpu_custom_call.1} parent=63 // pred_region
          %461 = dma.done %s454, 128
        $region72: #{tpu_custom_call.1} parent=63 // pred_fallthru
          _
        %s462 = sand.u32 %s33, 1
        %s463 = scalar_lea.sflag [#allocation6], %s462
        %s464 = sand.u32 %s93, 1
        %s465 = smul.addr %s464, 8
        %s466 = scalar_lea.vmem [#allocation7], %s465
        // Predicated region
        $region73: #{tpu_custom_call.1} parent=63 // pred_check
          %p467 = pneg %p106
        $region74: #{tpu_custom_call.1} parent=63 // pred_check_branch
          %469 = sbr.rel (%p467) target = $region76
        $region75: #{tpu_custom_call.1} parent=63 // pred_region
          %470 = dma.done %s463, 128
        $region76: #{tpu_custom_call.1} parent=63 // pred_fallthru
          _
        // Predicated region
        $region77: #{tpu_custom_call.1} parent=63 // pred_check
          %p471 = pneg %p127
        $region78: #{tpu_custom_call.1} parent=63 // pred_check_branch
          %473 = sbr.rel (%p471) target = $region80
        $region79: #{tpu_custom_call.1} parent=63 // pred_region
          %474 = dma.done [#allocation9], 512
        $region80: #{tpu_custom_call.1} parent=63 // pred_fallthru
          _
        // Predicated region
        $region81: #{tpu_custom_call.1} parent=63 // pred_check
          %p475 = pneg %p148
        $region82: #{tpu_custom_call.1} parent=63 // pred_check_branch
          %477 = sbr.rel (%p475) target = $region84
        $region83: #{tpu_custom_call.1} parent=63 // pred_region
          %478 = dma.done [#allocation9], 512
        $region84: #{tpu_custom_call.1} parent=63 // pred_fallthru
          _
        // Predicated region
        $region85: #{tpu_custom_call.1} parent=63 // pred_check
          %p479 = pneg %p169
        $region86: #{tpu_custom_call.1} parent=63 // pred_check_branch
          %481 = sbr.rel (%p479) target = $region88
        $region87: #{tpu_custom_call.1} parent=63 // pred_region
          %482 = dma.done [#allocation12], 512
        $region88: #{tpu_custom_call.1} parent=63 // pred_fallthru
          _
        // Predicated region
        $region89: #{tpu_custom_call.1} parent=63 // pred_check
          %p483 = pneg %p190
        $region90: #{tpu_custom_call.1} parent=63 // pred_check_branch
          %485 = sbr.rel (%p483) target = $region92
        $region91: #{tpu_custom_call.1} parent=63 // pred_region
          %486 = dma.done [#allocation12], 512
        $region92: #{tpu_custom_call.1} parent=63 // pred_fallthru
          _
        %s487 = sand.u32 %s41, 1
        %s488 = scalar_lea.sflag [#allocation3], %s487
        %s489 = sand.u32 %s41, 1
        %s490 = smul.addr %s489, 8
        %s491 = scalar_lea.vmem [#allocation2], %s490
        %p492 = pneg %p54
        %p493 = pneg %p51
        %s494 = sand.u32 %s33, 1
        %s495 = scalar_lea.sflag [#allocation6], %s494
        %s496 = sand.u32 %s67, 1
        %s497 = smul.addr %s496, 8
        %s498 = scalar_lea.vmem [#allocation5], %s497
        %p499 = pneg %p80
        %p500 = pneg %p77
        %s501 = sand.u32 %s33, 1
        %s502 = scalar_lea.sflag [#allocation6], %s501
        %s503 = sand.u32 %s93, 1
        %s504 = smul.addr %s503, 8
        %s505 = scalar_lea.vmem [#allocation7], %s504
        %p506 = pneg %p106
        %p507 = pneg %p103
        %p508 = pneg %p127
        %p509 = pneg %p124
        %p510 = pneg %p148
        %p511 = pneg %p145
        %p512 = pneg %p169
        %p513 = pneg %p166
        %p514 = pneg %p190
        %p515 = pneg %p187
        %p516 = pneg %p211
        %p517 = pneg %p208
        %p518 = pneg %p232
        %p519 = pneg %p229
        %p520 = pneg %p253
        %p521 = pneg %p250
        %p522 = pneg %p274
        %p523 = pneg %p271
        %p524 = pneg %p300
        %p525 = pneg %p297
        %s526 = sand.u32 %s287, 1
        %s527 = scalar_lea.sflag [#allocation4], %s526
        %s528 = sand.u32 %s287, 1
        %s529 = smul.addr %s528, 8
        %s530 = scalar_lea.vmem [#allocation14], %s529
        %v531 = vld [vmem:[%s448] sm:$0xff]
        %v532 = vld [vmem:[%s457] sm:$0xff]
        %v533 = vld [vmem:[%s466] sm:$0xff]
        %v534 = vld [vmem:[#allocation8] sm:$0xff]
        %v535 = vld [vmem:[#allocation8 + $0x8] sm:$0xff]
        %v536 = vld [vmem:[#allocation8 + $0x10] sm:$0xff]
        %v537 = vld [vmem:[#allocation8 + $0x18] sm:$0xff]
        %v538 = vld [vmem:[%s7] sm:$0x1]
        %v540 = vlaneseq
        %v541 = vshrl.u32 %v540, 7
        %v542 = vsub.s32 0, %v541
        %v543 = vrot.slane %v538, %v542
        %vm545 = vcmask 261120
        %v547 = vsel %vm545, %v531, 0
        %v550 = vsel %vm545, %v534, 0
        %v553 = vsel %vm545, %v535, 0
        %v556 = vsel %vm545, %v536, 0
        %v559 = vsel %vm545, %v537, 0
        %561 = vmatprep.subr.mxu0 0.0
        %562 = vmatpush1.xpose.msra.mxu0 %v550
        %563 = vmatprep.subr.mxu0 0.0
        %564 = vmatpush1.xpose.msra.mxu0 %v553
        %565 = vmatprep.subr.mxu0 0.0
        %566 = vmatpush1.xpose.msra.mxu0 %v556
        %567 = vmatprep.subr.mxu0 0.0
        %568 = vmatpush1.xpose.msra.mxu0 %v559
        %569 = vmatprep.subr.mxu0 0.0
        %570 = vmatpush1.xpose.msra.mxu0 0.0
        %571 = vmatprep.subr.mxu0 0.0
        %572 = vmatpush1.xpose.msra.mxu0 0.0
        %573 = vmatprep.subr.mxu0 0.0
        %574 = vmatpush1.xpose.msra.mxu0 0.0
        %575 = vmatprep.subr.mxu0 0.0
        %576 = vmatpush1.xpose.msra.mxu0 0.0
        %577 = vmatprep.subr.mxu0 0.0
        %578 = vmatpush1.xpose.msra.mxu0 0.0
        %579 = vmatprep.subr.mxu0 0.0
        %580 = vmatpush1.xpose.msra.mxu0 0.0
        %581 = vmatprep.subr.mxu0 0.0
        %582 = vmatpush1.xpose.msra.mxu0 0.0
        %583 = vmatprep.subr.mxu0 0.0
        %584 = vmatpush1.xpose.msra.mxu0 0.0
        %585 = vmatprep.subr.mxu0 0.0
        %586 = vmatpush1.xpose.msra.mxu0 0.0
        %587 = vmatprep.subr.mxu0 0.0
        %588 = vmatpush1.xpose.msra.mxu0 0.0
        %589 = vmatprep.subr.mxu0 0.0
        %590 = vmatpush1.xpose.msra.mxu0 0.0
        %591 = vmatprep.subr.mxu0 0.0
        %592 = vmatpush1.xpose.msra.mxu0 0.0
        %593 = vmatprep.subr.mxu0 0.0
        %594 = vmatpush1.xpose.msra.mxu0 0.0
        %595 = vmatprep.subr.mxu0 0.0
        %596 = vmatpush1.xpose.msra.mxu0 0.0
        %597 = vmatprep.subr.mxu0 0.0
        %598 = vmatpush1.xpose.msra.mxu0 0.0
        %599 = vmatprep.subr.mxu0 0.0
        %600 = vmatpush1.xpose.msra.mxu0 0.0
        %601 = vmatprep.subr.mxu0 0.0
        %602 = vmatpush1.xpose.msra.mxu0 0.0
        %603 = vmatprep.subr.mxu0 0.0
        %604 = vmatpush1.xpose.msra.mxu0 0.0
        %605 = vmatprep.subr.mxu0 0.0
        %606 = vmatpush1.xpose.msra.mxu0 0.0
        %607 = vmatprep.subr.mxu0 0.0
        %608 = vmatpush1.xpose.msra.mxu0 0.0
        %609 = vmatprep.subr.mxu0 0.0
        %610 = vmatpush1.xpose.msra.mxu0 0.0
        %611 = vmatprep.subr.mxu0 0.0
        %612 = vmatpush1.xpose.msra.mxu0 0.0
        %613 = vmatprep.subr.mxu0 0.0
        %614 = vmatpush1.xpose.msra.mxu0 0.0
        %615 = vmatprep.subr.mxu0 0.0
        %616 = vmatpush1.xpose.msra.mxu0 0.0
        %617 = vmatprep.subr.mxu0 0.0
        %618 = vmatpush1.xpose.msra.mxu0 0.0
        %619 = vmatprep.subr.mxu0 0.0
        %620 = vmatpush1.xpose.msra.mxu0 0.0
        %621 = vmatprep.subr.mxu0 0.0
        %622 = vmatpush1.xpose.msra.mxu0 0.0
        %623 = vmatprep.subr.mxu0 0.0
        %624 = vmatpush1.xpose.msra.mxu0 0.0
        %625 = vmatprep.mubr.f32.mxu0 0.0
        %626 = vmatmul.mubr.f32.gmra.mrb[0].mxu0 %v547
        %v627 = vpop.f32.mrb[0].mxu0
        %v628 = vadd.f32 %v543, %v627
        %v629 = vpop.f32.mrb[0].mxu0
        %630 = vdwg.mxu0
        %v631 = vld [vmem:[#allocation10] sm:$0xff]
        %v632 = vld [vmem:[#allocation10 + $0x8] sm:$0xff]
        %v633 = vld [vmem:[#allocation10 + $0x10] sm:$0xff]
        %v634 = vld [vmem:[#allocation10 + $0x18] sm:$0xff]
        %v635 = vld [vmem:[%s8] sm:$0x1]
        %v637 = vlaneseq
        %v638 = vshrl.u32 %v637, 7
        %v639 = vsub.s32 0, %v638
        %v640 = vrot.slane %v635, %v639
        %v643 = vsel %vm545, %v532, 0
        %v646 = vsel %vm545, %v631, 0
        %v649 = vsel %vm545, %v632, 0
        %v652 = vsel %vm545, %v633, 0
        %v655 = vsel %vm545, %v634, 0
        %657 = vmatprep.subr.mxu0 0.0
        %658 = vmatpush1.xpose.msra.mxu0 %v646
        %659 = vmatprep.subr.mxu0 0.0
        %660 = vmatpush1.xpose.msra.mxu0 %v649
        %661 = vmatprep.subr.mxu0 0.0
        %662 = vmatpush1.xpose.msra.mxu0 %v652
        %663 = vmatprep.subr.mxu0 0.0
        %664 = vmatpush1.xpose.msra.mxu0 %v655
        %665 = vmatprep.subr.mxu0 0.0
        %666 = vmatpush1.xpose.msra.mxu0 0.0
        %667 = vmatprep.subr.mxu0 0.0
        %668 = vmatpush1.xpose.msra.mxu0 0.0
        %669 = vmatprep.subr.mxu0 0.0
        %670 = vmatpush1.xpose.msra.mxu0 0.0
        %671 = vmatprep.subr.mxu0 0.0
        %672 = vmatpush1.xpose.msra.mxu0 0.0
        %673 = vmatprep.subr.mxu0 0.0
        %674 = vmatpush1.xpose.msra.mxu0 0.0
        %675 = vmatprep.subr.mxu0 0.0
        %676 = vmatpush1.xpose.msra.mxu0 0.0
        %677 = vmatprep.subr.mxu0 0.0
        %678 = vmatpush1.xpose.msra.mxu0 0.0
        %679 = vmatprep.subr.mxu0 0.0
        %680 = vmatpush1.xpose.msra.mxu0 0.0
        %681 = vmatprep.subr.mxu0 0.0
        %682 = vmatpush1.xpose.msra.mxu0 0.0
        %683 = vmatprep.subr.mxu0 0.0
        %684 = vmatpush1.xpose.msra.mxu0 0.0
        %685 = vmatprep.subr.mxu0 0.0
        %686 = vmatpush1.xpose.msra.mxu0 0.0
        %687 = vmatprep.subr.mxu0 0.0
        %688 = vmatpush1.xpose.msra.mxu0 0.0
        %689 = vmatprep.subr.mxu0 0.0
        %690 = vmatpush1.xpose.msra.mxu0 0.0
        %691 = vmatprep.subr.mxu0 0.0
        %692 = vmatpush1.xpose.msra.mxu0 0.0
        %693 = vmatprep.subr.mxu0 0.0
        %694 = vmatpush1.xpose.msra.mxu0 0.0
        %695 = vmatprep.subr.mxu0 0.0
        %696 = vmatpush1.xpose.msra.mxu0 0.0
        %697 = vmatprep.subr.mxu0 0.0
        %698 = vmatpush1.xpose.msra.mxu0 0.0
        %699 = vmatprep.subr.mxu0 0.0
        %700 = vmatpush1.xpose.msra.mxu0 0.0
        %701 = vmatprep.subr.mxu0 0.0
        %702 = vmatpush1.xpose.msra.mxu0 0.0
        %703 = vmatprep.subr.mxu0 0.0
        %704 = vmatpush1.xpose.msra.mxu0 0.0
        %705 = vmatprep.subr.mxu0 0.0
        %706 = vmatpush1.xpose.msra.mxu0 0.0
        %707 = vmatprep.subr.mxu0 0.0
        %708 = vmatpush1.xpose.msra.mxu0 0.0
        %709 = vmatprep.subr.mxu0 0.0
        %710 = vmatpush1.xpose.msra.mxu0 0.0
        %711 = vmatprep.subr.mxu0 0.0
        %712 = vmatpush1.xpose.msra.mxu0 0.0
        %713 = vmatprep.subr.mxu0 0.0
        %714 = vmatpush1.xpose.msra.mxu0 0.0
        %715 = vmatprep.subr.mxu0 0.0
        %716 = vmatpush1.xpose.msra.mxu0 0.0
        %717 = vmatprep.subr.mxu0 0.0
        %718 = vmatpush1.xpose.msra.mxu0 0.0
        %719 = vmatprep.subr.mxu0 0.0
        %720 = vmatpush1.xpose.msra.mxu0 0.0
        %721 = vmatprep.mubr.f32.mxu0 0.0
        %722 = vmatmul.mubr.f32.gmra.mrb[0].mxu0 %v643
        %v723 = vpop.f32.mrb[0].mxu0
        %v724 = vadd.f32 %v640, %v723
        %v725 = vpop.f32.mrb[0].mxu0
        %726 = vdwg.mxu0
        %v727 = vld [vmem:[#allocation11] sm:$0xff]
        %v728 = vld [vmem:[#allocation11 + $0x8] sm:$0xff]
        %v729 = vld [vmem:[#allocation11 + $0x10] sm:$0xff]
        %v730 = vld [vmem:[#allocation11 + $0x18] sm:$0xff]
        %v731 = vld [vmem:[%s9] sm:$0x1]
        %v733 = vlaneseq
        %v734 = vshrl.u32 %v733, 7
        %v735 = vsub.s32 0, %v734
        %v736 = vrot.slane %v731, %v735
        %v739 = vsel %vm545, %v533, 0
        %v742 = vsel %vm545, %v727, 0
        %v745 = vsel %vm545, %v728, 0
        %v748 = vsel %vm545, %v729, 0
        %v751 = vsel %vm545, %v730, 0
        %753 = vmatprep.subr.mxu0 0.0
        %754 = vmatpush1.xpose.msra.mxu0 %v742
        %755 = vmatprep.subr.mxu0 0.0
        %756 = vmatpush1.xpose.msra.mxu0 %v745
        %757 = vmatprep.subr.mxu0 0.0
        %758 = vmatpush1.xpose.msra.mxu0 %v748
        %759 = vmatprep.subr.mxu0 0.0
        %760 = vmatpush1.xpose.msra.mxu0 %v751
        %761 = vmatprep.subr.mxu0 0.0
        %762 = vmatpush1.xpose.msra.mxu0 0.0
        %763 = vmatprep.subr.mxu0 0.0
        %764 = vmatpush1.xpose.msra.mxu0 0.0
        %765 = vmatprep.subr.mxu0 0.0
        %766 = vmatpush1.xpose.msra.mxu0 0.0
        %767 = vmatprep.subr.mxu0 0.0
        %768 = vmatpush1.xpose.msra.mxu0 0.0
        %769 = vmatprep.subr.mxu0 0.0
        %770 = vmatpush1.xpose.msra.mxu0 0.0
        %771 = vmatprep.subr.mxu0 0.0
        %772 = vmatpush1.xpose.msra.mxu0 0.0
        %773 = vmatprep.subr.mxu0 0.0
        %774 = vmatpush1.xpose.msra.mxu0 0.0
        %775 = vmatprep.subr.mxu0 0.0
        %776 = vmatpush1.xpose.msra.mxu0 0.0
        %777 = vmatprep.subr.mxu0 0.0
        %778 = vmatpush1.xpose.msra.mxu0 0.0
        %779 = vmatprep.subr.mxu0 0.0
        %780 = vmatpush1.xpose.msra.mxu0 0.0
        %781 = vmatprep.subr.mxu0 0.0
        %782 = vmatpush1.xpose.msra.mxu0 0.0
        %783 = vmatprep.subr.mxu0 0.0
        %784 = vmatpush1.xpose.msra.mxu0 0.0
        %785 = vmatprep.subr.mxu0 0.0
        %786 = vmatpush1.xpose.msra.mxu0 0.0
        %787 = vmatprep.subr.mxu0 0.0
        %788 = vmatpush1.xpose.msra.mxu0 0.0
        %789 = vmatprep.subr.mxu0 0.0
        %790 = vmatpush1.xpose.msra.mxu0 0.0
        %791 = vmatprep.subr.mxu0 0.0
        %792 = vmatpush1.xpose.msra.mxu0 0.0
        %793 = vmatprep.subr.mxu0 0.0
        %794 = vmatpush1.xpose.msra.mxu0 0.0
        %795 = vmatprep.subr.mxu0 0.0
        %796 = vmatpush1.xpose.msra.mxu0 0.0
        %797 = vmatprep.subr.mxu0 0.0
        %798 = vmatpush1.xpose.msra.mxu0 0.0
        %799 = vmatprep.subr.mxu0 0.0
        %800 = vmatpush1.xpose.msra.mxu0 0.0
        %801 = vmatprep.subr.mxu0 0.0
        %802 = vmatpush1.xpose.msra.mxu0 0.0
        %803 = vmatprep.subr.mxu0 0.0
        %804 = vmatpush1.xpose.msra.mxu0 0.0
        %805 = vmatprep.subr.mxu0 0.0
        %806 = vmatpush1.xpose.msra.mxu0 0.0
        %807 = vmatprep.subr.mxu0 0.0
        %808 = vmatpush1.xpose.msra.mxu0 0.0
        %809 = vmatprep.subr.mxu0 0.0
        %810 = vmatpush1.xpose.msra.mxu0 0.0
        %811 = vmatprep.subr.mxu0 0.0
        %812 = vmatpush1.xpose.msra.mxu0 0.0
        %813 = vmatprep.subr.mxu0 0.0
        %814 = vmatpush1.xpose.msra.mxu0 0.0
        %815 = vmatprep.subr.mxu0 0.0
        %816 = vmatpush1.xpose.msra.mxu0 0.0
        %817 = vmatprep.mubr.f32.mxu0 0.0
        %818 = vmatmul.mubr.f32.gmra.mrb[0].mxu0 %v739
        %v819 = vpop.f32.mrb[0].mxu0
        %v820 = vadd.f32 %v736, %v819
        %v821 = vpop.f32.mrb[0].mxu0
        %822 = vdwg.mxu0
        %v823 = vlaneseq
        %v824 = vshrl.u32 %v823, 7
        %v825 = vlaneseq
        %v826 = vand.u32 %v825, 127
        %vm827 = vcmp.ge.s32.totalorder %v824, %v826
        %vm828 = vcmask 64512
        %v830 = vsel %vm828, %v628, 0
        %v833 = vsel %vm828, %v724, 0
        %835 = vmatprep.subr.mxu0 0.0
        %836 = vmatpush1.xpose.msra.mxu0 %v833
        %837 = vmatprep.subr.mxu0 0.0
        %838 = vmatpush1.xpose.msra.mxu0 0.0
        %839 = vmatprep.subr.mxu0 0.0
        %840 = vmatpush1.xpose.msra.mxu0 0.0
        %841 = vmatprep.subr.mxu0 0.0
        %842 = vmatpush1.xpose.msra.mxu0 0.0
        %843 = vmatprep.subr.mxu0 0.0
        %844 = vmatpush1.xpose.msra.mxu0 0.0
        %845 = vmatprep.subr.mxu0 0.0
        %846 = vmatpush1.xpose.msra.mxu0 0.0
        %847 = vmatprep.subr.mxu0 0.0
        %848 = vmatpush1.xpose.msra.mxu0 0.0
        %849 = vmatprep.subr.mxu0 0.0
        %850 = vmatpush1.xpose.msra.mxu0 0.0
        %851 = vmatprep.subr.mxu0 0.0
        %852 = vmatpush1.xpose.msra.mxu0 0.0
        %853 = vmatprep.subr.mxu0 0.0
        %854 = vmatpush1.xpose.msra.mxu0 0.0
        %855 = vmatprep.subr.mxu0 0.0
        %856 = vmatpush1.xpose.msra.mxu0 0.0
        %857 = vmatprep.subr.mxu0 0.0
        %858 = vmatpush1.xpose.msra.mxu0 0.0
        %859 = vmatprep.subr.mxu0 0.0
        %860 = vmatpush1.xpose.msra.mxu0 0.0
        %861 = vmatprep.subr.mxu0 0.0
        %862 = vmatpush1.xpose.msra.mxu0 0.0
        %863 = vmatprep.subr.mxu0 0.0
        %864 = vmatpush1.xpose.msra.mxu0 0.0
        %865 = vmatprep.subr.mxu0 0.0
        %866 = vmatpush1.xpose.msra.mxu0 0.0
        %867 = vmatprep.subr.mxu0 0.0
        %868 = vmatpush1.xpose.msra.mxu0 0.0
        %869 = vmatprep.subr.mxu0 0.0
        %870 = vmatpush1.xpose.msra.mxu0 0.0
        %871 = vmatprep.subr.mxu0 0.0
        %872 = vmatpush1.xpose.msra.mxu0 0.0
        %873 = vmatprep.subr.mxu0 0.0
        %874 = vmatpush1.xpose.msra.mxu0 0.0
        %875 = vmatprep.subr.mxu0 0.0
        %876 = vmatpush1.xpose.msra.mxu0 0.0
        %877 = vmatprep.subr.mxu0 0.0
        %878 = vmatpush1.xpose.msra.mxu0 0.0
        %879 = vmatprep.subr.mxu0 0.0
        %880 = vmatpush1.xpose.msra.mxu0 0.0
        %881 = vmatprep.subr.mxu0 0.0
        %882 = vmatpush1.xpose.msra.mxu0 0.0
        %883 = vmatprep.subr.mxu0 0.0
        %884 = vmatpush1.xpose.msra.mxu0 0.0
        %885 = vmatprep.subr.mxu0 0.0
        %886 = vmatpush1.xpose.msra.mxu0 0.0
        %887 = vmatprep.subr.mxu0 0.0
        %888 = vmatpush1.xpose.msra.mxu0 0.0
        %889 = vmatprep.subr.mxu0 0.0
        %890 = vmatpush1.xpose.msra.mxu0 0.0
        %891 = vmatprep.subr.mxu0 0.0
        %892 = vmatpush1.xpose.msra.mxu0 0.0
        %893 = vmatprep.subr.mxu0 0.0
        %894 = vmatpush1.xpose.msra.mxu0 0.0
        %895 = vmatprep.subr.mxu0 0.0
        %896 = vmatpush1.xpose.msra.mxu0 0.0
        %897 = vmatprep.subr.mxu0 0.0
        %898 = vmatpush1.xpose.msra.mxu0 0.0
        %899 = vmatprep.mubr.f32.mxu0 0.0
        %900 = vmatmul.mubr.f32.gmra.mrb[0].mxu0 %v830
        %v901 = vpop.f32.mrb[0].mxu0
        %v902 = vadd.f32 0.0, %v901
        %v903 = vpop.f32.mrb[0].mxu0
        %904 = vdwg.mxu0
        %v905 = vmul.f32 %v902, 0.35355338
        %v906 = vsel %vm827, %v905, 1e-09
        %v907 = vsel %vm828, %v906, -inf
        %908 = vmax.xlane.f32.xlu0 %v907
        %v909 = vpop.xlane.xlu0 %908
        %v910 = vsub.f32 %v906, %v909
        %v911 = vmul.f32 %v910, 1.442695
        %v912 = vpow.pop %v911
        %v913 = vsel %vm828, %v912, 0.0
        %914 = vadd.xlane.f32.xlu0 %v913
        %v915 = vpop.xlane.xlu0 %914
        %v916 = vrcp.pop %v915
        %v917 = vmul.f32 %v912, %v916
        %v919 = vsel %vm828, %v917, 0
        %921 = vmatprep.subr.mxu0 0.0
        %922 = vmatpush1.msra.mxu0 %v820
        %923 = vmatprep.subr.mxu0 0.0
        %924 = vmatpush1.msra.mxu0 0.0
        %925 = vmatprep.subr.mxu0 0.0
        %926 = vmatpush1.msra.mxu0 0.0
        %927 = vmatprep.subr.mxu0 0.0
        %928 = vmatpush1.msra.mxu0 0.0
        %929 = vmatprep.subr.mxu0 0.0
        %930 = vmatpush1.msra.mxu0 0.0
        %931 = vmatprep.subr.mxu0 0.0
        %932 = vmatpush1.msra.mxu0 0.0
        %933 = vmatprep.subr.mxu0 0.0
        %934 = vmatpush1.msra.mxu0 0.0
        %935 = vmatprep.subr.mxu0 0.0
        %936 = vmatpush1.msra.mxu0 0.0
        %937 = vmatprep.subr.mxu0 0.0
        %938 = vmatpush1.msra.mxu0 0.0
        %939 = vmatprep.subr.mxu0 0.0
        %940 = vmatpush1.msra.mxu0 0.0
        %941 = vmatprep.subr.mxu0 0.0
        %942 = vmatpush1.msra.mxu0 0.0
        %943 = vmatprep.subr.mxu0 0.0
        %944 = vmatpush1.msra.mxu0 0.0
        %945 = vmatprep.subr.mxu0 0.0
        %946 = vmatpush1.msra.mxu0 0.0
        %947 = vmatprep.subr.mxu0 0.0
        %948 = vmatpush1.msra.mxu0 0.0
        %949 = vmatprep.subr.mxu0 0.0
        %950 = vmatpush1.msra.mxu0 0.0
        %951 = vmatprep.subr.mxu0 0.0
        %952 = vmatpush1.msra.mxu0 0.0
        %953 = vmatprep.subr.mxu0 0.0
        %954 = vmatpush1.msra.mxu0 0.0
        %955 = vmatprep.subr.mxu0 0.0
        %956 = vmatpush1.msra.mxu0 0.0
        %957 = vmatprep.subr.mxu0 0.0
        %958 = vmatpush1.msra.mxu0 0.0
        %959 = vmatprep.subr.mxu0 0.0
        %960 = vmatpush1.msra.mxu0 0.0
        %961 = vmatprep.subr.mxu0 0.0
        %962 = vmatpush1.msra.mxu0 0.0
        %963 = vmatprep.subr.mxu0 0.0
        %964 = vmatpush1.msra.mxu0 0.0
        %965 = vmatprep.subr.mxu0 0.0
        %966 = vmatpush1.msra.mxu0 0.0
        %967 = vmatprep.subr.mxu0 0.0
        %968 = vmatpush1.msra.mxu0 0.0
        %969 = vmatprep.subr.mxu0 0.0
        %970 = vmatpush1.msra.mxu0 0.0
        %971 = vmatprep.subr.mxu0 0.0
        %972 = vmatpush1.msra.mxu0 0.0
        %973 = vmatprep.subr.mxu0 0.0
        %974 = vmatpush1.msra.mxu0 0.0
        %975 = vmatprep.subr.mxu0 0.0
        %976 = vmatpush1.msra.mxu0 0.0
        %977 = vmatprep.subr.mxu0 0.0
        %978 = vmatpush1.msra.mxu0 0.0
        %979 = vmatprep.subr.mxu0 0.0
        %980 = vmatpush1.msra.mxu0 0.0
        %981 = vmatprep.subr.mxu0 0.0
        %982 = vmatpush1.msra.mxu0 0.0
        %983 = vmatprep.subr.mxu0 0.0
        %984 = vmatpush1.msra.mxu0 0.0
        %985 = vmatprep.mubr.f32.mxu0 0.0
        %986 = vmatmul.mubr.f32.gmra.mrb[0].mxu0 %v919
        %v987 = vpop.f32.mrb[0].mxu0
        %v988 = vadd.f32 0.0, %v987
        %v989 = vpop.f32.mrb[0].mxu0
        %990 = vdwg.mxu0
        %991 = vrot.lane.b32.xlu0 %v628, 120
        %v992 = vpop.permute.xlu0 %991
        %993 = vrot.lane.b32.xlu0 %v724, 120
        %v994 = vpop.permute.xlu0 %993
        %v995 = vsel %vm828, %v992, 0
        %v997 = vsel %vm828, %v994, 0
        %999 = vmatprep.subr.mxu0 0.0
        %1000 = vmatpush1.xpose.msra.mxu0 %v997
        %1001 = vmatprep.subr.mxu0 0.0
        %1002 = vmatpush1.xpose.msra.mxu0 0.0
        %1003 = vmatprep.subr.mxu0 0.0
        %1004 = vmatpush1.xpose.msra.mxu0 0.0
        %1005 = vmatprep.subr.mxu0 0.0
        %1006 = vmatpush1.xpose.msra.mxu0 0.0
        %1007 = vmatprep.subr.mxu0 0.0
        %1008 = vmatpush1.xpose.msra.mxu0 0.0
        %1009 = vmatprep.subr.mxu0 0.0
        %1010 = vmatpush1.xpose.msra.mxu0 0.0
        %1011 = vmatprep.subr.mxu0 0.0
        %1012 = vmatpush1.xpose.msra.mxu0 0.0
        %1013 = vmatprep.subr.mxu0 0.0
        %1014 = vmatpush1.xpose.msra.mxu0 0.0
        %1015 = vmatprep.subr.mxu0 0.0
        %1016 = vmatpush1.xpose.msra.mxu0 0.0
        %1017 = vmatprep.subr.mxu0 0.0
        %1018 = vmatpush1.xpose.msra.mxu0 0.0
        %1019 = vmatprep.subr.mxu0 0.0
        %1020 = vmatpush1.xpose.msra.mxu0 0.0
        %1021 = vmatprep.subr.mxu0 0.0
        %1022 = vmatpush1.xpose.msra.mxu0 0.0
        %1023 = vmatprep.subr.mxu0 0.0
        %1024 = vmatpush1.xpose.msra.mxu0 0.0
        %1025 = vmatprep.subr.mxu0 0.0
        %1026 = vmatpush1.xpose.msra.mxu0 0.0
        %1027 = vmatprep.subr.mxu0 0.0
        %1028 = vmatpush1.xpose.msra.mxu0 0.0
        %1029 = vmatprep.subr.mxu0 0.0
        %1030 = vmatpush1.xpose.msra.mxu0 0.0
        %1031 = vmatprep.subr.mxu0 0.0
        %1032 = vmatpush1.xpose.msra.mxu0 0.0
        %1033 = vmatprep.subr.mxu0 0.0
        %1034 = vmatpush1.xpose.msra.mxu0 0.0
        %1035 = vmatprep.subr.mxu0 0.0
        %1036 = vmatpush1.xpose.msra.mxu0 0.0
        %1037 = vmatprep.subr.mxu0 0.0
        %1038 = vmatpush1.xpose.msra.mxu0 0.0
        %1039 = vmatprep.subr.mxu0 0.0
        %1040 = vmatpush1.xpose.msra.mxu0 0.0
        %1041 = vmatprep.subr.mxu0 0.0
        %1042 = vmatpush1.xpose.msra.mxu0 0.0
        %1043 = vmatprep.subr.mxu0 0.0
        %1044 = vmatpush1.xpose.msra.mxu0 0.0
        %1045 = vmatprep.subr.mxu0 0.0
        %1046 = vmatpush1.xpose.msra.mxu0 0.0
        %1047 = vmatprep.subr.mxu0 0.0
        %1048 = vmatpush1.xpose.msra.mxu0 0.0
        %1049 = vmatprep.subr.mxu0 0.0
        %1050 = vmatpush1.xpose.msra.mxu0 0.0
        %1051 = vmatprep.subr.mxu0 0.0
        %1052 = vmatpush1.xpose.msra.mxu0 0.0
        %1053 = vmatprep.subr.mxu0 0.0
        %1054 = vmatpush1.xpose.msra.mxu0 0.0
        %1055 = vmatprep.subr.mxu0 0.0
        %1056 = vmatpush1.xpose.msra.mxu0 0.0
        %1057 = vmatprep.subr.mxu0 0.0
        %1058 = vmatpush1.xpose.msra.mxu0 0.0
        %1059 = vmatprep.subr.mxu0 0.0
        %1060 = vmatpush1.xpose.msra.mxu0 0.0
        %1061 = vmatprep.subr.mxu0 0.0
        %1062 = vmatpush1.xpose.msra.mxu0 0.0
        %1063 = vmatprep.mubr.f32.mxu0 0.0
        %1064 = vmatmul.mubr.f32.gmra.mrb[0].mxu0 %v995
        %v1065 = vpop.f32.mrb[0].mxu0
        %v1066 = vadd.f32 0.0, %v1065
        %v1067 = vpop.f32.mrb[0].mxu0
        %1068 = vdwg.mxu0
        %v1069 = vmul.f32 %v1066, 0.35355338
        %v1070 = vsel %vm827, %v1069, 1e-09
        %v1071 = vsel %vm828, %v1070, -inf
        %1072 = vmax.xlane.f32.xlu0 %v1071
        %v1073 = vpop.xlane.xlu0 %1072
        %v1074 = vsub.f32 %v1070, %v1073
        %v1075 = vmul.f32 %v1074, 1.442695
        %v1076 = vpow.pop %v1075
        %v1077 = vsel %vm828, %v1076, 0.0
        %1078 = vadd.xlane.f32.xlu0 %v1077
        %v1079 = vpop.xlane.xlu0 %1078
        %v1080 = vrcp.pop %v1079
        %v1081 = vmul.f32 %v1076, %v1080
        %1083 = vrot.lane.b32.xlu0 %v820, 120
        %v1084 = vpop.permute.xlu0 %1083
        %v1087 = vsel %vm828, %v1081, 0
        %1089 = vmatprep.subr.mxu0 0.0
        %1090 = vmatpush1.msra.mxu0 %v1084
        %1091 = vmatprep.subr.mxu0 0.0
        %1092 = vmatpush1.msra.mxu0 0.0
        %1093 = vmatprep.subr.mxu0 0.0
        %1094 = vmatpush1.msra.mxu0 0.0
        %1095 = vmatprep.subr.mxu0 0.0
        %1096 = vmatpush1.msra.mxu0 0.0
        %1097 = vmatprep.subr.mxu0 0.0
        %1098 = vmatpush1.msra.mxu0 0.0
        %1099 = vmatprep.subr.mxu0 0.0
        %1100 = vmatpush1.msra.mxu0 0.0
        %1101 = vmatprep.subr.mxu0 0.0
        %1102 = vmatpush1.msra.mxu0 0.0
        %1103 = vmatprep.subr.mxu0 0.0
        %1104 = vmatpush1.msra.mxu0 0.0
        %1105 = vmatprep.subr.mxu0 0.0
        %1106 = vmatpush1.msra.mxu0 0.0
        %1107 = vmatprep.subr.mxu0 0.0
        %1108 = vmatpush1.msra.mxu0 0.0
        %1109 = vmatprep.subr.mxu0 0.0
        %1110 = vmatpush1.msra.mxu0 0.0
        %1111 = vmatprep.subr.mxu0 0.0
        %1112 = vmatpush1.msra.mxu0 0.0
        %1113 = vmatprep.subr.mxu0 0.0
        %1114 = vmatpush1.msra.mxu0 0.0
        %1115 = vmatprep.subr.mxu0 0.0
        %1116 = vmatpush1.msra.mxu0 0.0
        %1117 = vmatprep.subr.mxu0 0.0
        %1118 = vmatpush1.msra.mxu0 0.0
        %1119 = vmatprep.subr.mxu0 0.0
        %1120 = vmatpush1.msra.mxu0 0.0
        %1121 = vmatprep.subr.mxu0 0.0
        %1122 = vmatpush1.msra.mxu0 0.0
        %1123 = vmatprep.subr.mxu0 0.0
        %1124 = vmatpush1.msra.mxu0 0.0
        %1125 = vmatprep.subr.mxu0 0.0
        %1126 = vmatpush1.msra.mxu0 0.0
        %1127 = vmatprep.subr.mxu0 0.0
        %1128 = vmatpush1.msra.mxu0 0.0
        %1129 = vmatprep.subr.mxu0 0.0
        %1130 = vmatpush1.msra.mxu0 0.0
        %1131 = vmatprep.subr.mxu0 0.0
        %1132 = vmatpush1.msra.mxu0 0.0
        %1133 = vmatprep.subr.mxu0 0.0
        %1134 = vmatpush1.msra.mxu0 0.0
        %1135 = vmatprep.subr.mxu0 0.0
        %1136 = vmatpush1.msra.mxu0 0.0
        %1137 = vmatprep.subr.mxu0 0.0
        %1138 = vmatpush1.msra.mxu0 0.0
        %1139 = vmatprep.subr.mxu0 0.0
        %1140 = vmatpush1.msra.mxu0 0.0
        %1141 = vmatprep.subr.mxu0 0.0
        %1142 = vmatpush1.msra.mxu0 0.0
        %1143 = vmatprep.subr.mxu0 0.0
        %1144 = vmatpush1.msra.mxu0 0.0
        %1145 = vmatprep.subr.mxu0 0.0
        %1146 = vmatpush1.msra.mxu0 0.0
        %1147 = vmatprep.subr.mxu0 0.0
        %1148 = vmatpush1.msra.mxu0 0.0
        %1149 = vmatprep.subr.mxu0 0.0
        %1150 = vmatpush1.msra.mxu0 0.0
        %1151 = vmatprep.subr.mxu0 0.0
        %1152 = vmatpush1.msra.mxu0 0.0
        %1153 = vmatprep.mubr.f32.mxu0 0.0
        %1154 = vmatmul.mubr.f32.gmra.mrb[0].mxu0 %v1087
        %v1155 = vpop.f32.mrb[0].mxu0
        %v1156 = vadd.f32 0.0, %v1155
        %v1157 = vpop.f32.mrb[0].mxu0
        %1158 = vdwg.mxu0
        %1159 = vrot.lane.b32.xlu0 %v628, 112
        %v1160 = vpop.permute.xlu0 %1159
        %1161 = vrot.lane.b32.xlu0 %v724, 112
        %v1162 = vpop.permute.xlu0 %1161
        %v1163 = vsel %vm828, %v1160, 0
        %v1165 = vsel %vm828, %v1162, 0
        %1167 = vmatprep.subr.mxu0 0.0
        %1168 = vmatpush1.xpose.msra.mxu0 %v1165
        %1169 = vmatprep.subr.mxu0 0.0
        %1170 = vmatpush1.xpose.msra.mxu0 0.0
        %1171 = vmatprep.subr.mxu0 0.0
        %1172 = vmatpush1.xpose.msra.mxu0 0.0
        %1173 = vmatprep.subr.mxu0 0.0
        %1174 = vmatpush1.xpose.msra.mxu0 0.0
        %1175 = vmatprep.subr.mxu0 0.0
        %1176 = vmatpush1.xpose.msra.mxu0 0.0
        %1177 = vmatprep.subr.mxu0 0.0
        %1178 = vmatpush1.xpose.msra.mxu0 0.0
        %1179 = vmatprep.subr.mxu0 0.0
        %1180 = vmatpush1.xpose.msra.mxu0 0.0
        %1181 = vmatprep.subr.mxu0 0.0
        %1182 = vmatpush1.xpose.msra.mxu0 0.0
        %1183 = vmatprep.subr.mxu0 0.0
        %1184 = vmatpush1.xpose.msra.mxu0 0.0
        %1185 = vmatprep.subr.mxu0 0.0
        %1186 = vmatpush1.xpose.msra.mxu0 0.0
        %1187 = vmatprep.subr.mxu0 0.0
        %1188 = vmatpush1.xpose.msra.mxu0 0.0
        %1189 = vmatprep.subr.mxu0 0.0
        %1190 = vmatpush1.xpose.msra.mxu0 0.0
        %1191 = vmatprep.subr.mxu0 0.0
        %1192 = vmatpush1.xpose.msra.mxu0 0.0
        %1193 = vmatprep.subr.mxu0 0.0
        %1194 = vmatpush1.xpose.msra.mxu0 0.0
        %1195 = vmatprep.subr.mxu0 0.0
        %1196 = vmatpush1.xpose.msra.mxu0 0.0
        %1197 = vmatprep.subr.mxu0 0.0
        %1198 = vmatpush1.xpose.msra.mxu0 0.0
        %1199 = vmatprep.subr.mxu0 0.0
        %1200 = vmatpush1.xpose.msra.mxu0 0.0
        %1201 = vmatprep.subr.mxu0 0.0
        %1202 = vmatpush1.xpose.msra.mxu0 0.0
        %1203 = vmatprep.subr.mxu0 0.0
        %1204 = vmatpush1.xpose.msra.mxu0 0.0
        %1205 = vmatprep.subr.mxu0 0.0
        %1206 = vmatpush1.xpose.msra.mxu0 0.0
        %1207 = vmatprep.subr.mxu0 0.0
        %1208 = vmatpush1.xpose.msra.mxu0 0.0
        %1209 = vmatprep.subr.mxu0 0.0
        %1210 = vmatpush1.xpose.msra.mxu0 0.0
        %1211 = vmatprep.subr.mxu0 0.0
        %1212 = vmatpush1.xpose.msra.mxu0 0.0
        %1213 = vmatprep.subr.mxu0 0.0
        %1214 = vmatpush1.xpose.msra.mxu0 0.0
        %1215 = vmatprep.subr.mxu0 0.0
        %1216 = vmatpush1.xpose.msra.mxu0 0.0
        %1217 = vmatprep.subr.mxu0 0.0
        %1218 = vmatpush1.xpose.msra.mxu0 0.0
        %1219 = vmatprep.subr.mxu0 0.0
        %1220 = vmatpush1.xpose.msra.mxu0 0.0
        %1221 = vmatprep.subr.mxu0 0.0
        %1222 = vmatpush1.xpose.msra.mxu0 0.0
        %1223 = vmatprep.subr.mxu0 0.0
        %1224 = vmatpush1.xpose.msra.mxu0 0.0
        %1225 = vmatprep.subr.mxu0 0.0
        %1226 = vmatpush1.xpose.msra.mxu0 0.0
        %1227 = vmatprep.subr.mxu0 0.0
        %1228 = vmatpush1.xpose.msra.mxu0 0.0
        %1229 = vmatprep.subr.mxu0 0.0
        %1230 = vmatpush1.xpose.msra.mxu0 0.0
        %1231 = vmatprep.mubr.f32.mxu0 0.0
        %1232 = vmatmul.mubr.f32.gmra.mrb[0].mxu0 %v1163
        %v1233 = vpop.f32.mrb[0].mxu0
        %v1234 = vadd.f32 0.0, %v1233
        %v1235 = vpop.f32.mrb[0].mxu0
        %1236 = vdwg.mxu0
        %v1237 = vmul.f32 %v1234, 0.35355338
        %v1238 = vsel %vm827, %v1237, 1e-09
        %v1239 = vsel %vm828, %v1238, -inf
        %1240 = vmax.xlane.f32.xlu0 %v1239
        %v1241 = vpop.xlane.xlu0 %1240
        %v1242 = vsub.f32 %v1238, %v1241
        %v1243 = vmul.f32 %v1242, 1.442695
        %v1244 = vpow.pop %v1243
        %v1245 = vsel %vm828, %v1244, 0.0
        %1246 = vadd.xlane.f32.xlu0 %v1245
        %v1247 = vpop.xlane.xlu0 %1246
        %v1248 = vrcp.pop %v1247
        %v1249 = vmul.f32 %v1244, %v1248
        %1250 = vrot.lane.b32.xlu0 %v820, 112
        %v1251 = vpop.permute.xlu0 %1250
        %v1254 = vsel %vm828, %v1249, 0
        %1256 = vmatprep.subr.mxu0 0.0
        %1257 = vmatpush1.msra.mxu0 %v1251
        %1258 = vmatprep.subr.mxu0 0.0
        %1259 = vmatpush1.msra.mxu0 0.0
        %1260 = vmatprep.subr.mxu0 0.0
        %1261 = vmatpush1.msra.mxu0 0.0
        %1262 = vmatprep.subr.mxu0 0.0
        %1263 = vmatpush1.msra.mxu0 0.0
        %1264 = vmatprep.subr.mxu0 0.0
        %1265 = vmatpush1.msra.mxu0 0.0
        %1266 = vmatprep.subr.mxu0 0.0
        %1267 = vmatpush1.msra.mxu0 0.0
        %1268 = vmatprep.subr.mxu0 0.0
        %1269 = vmatpush1.msra.mxu0 0.0
        %1270 = vmatprep.subr.mxu0 0.0
        %1271 = vmatpush1.msra.mxu0 0.0
        %1272 = vmatprep.subr.mxu0 0.0
        %1273 = vmatpush1.msra.mxu0 0.0
        %1274 = vmatprep.subr.mxu0 0.0
        %1275 = vmatpush1.msra.mxu0 0.0
        %1276 = vmatprep.subr.mxu0 0.0
        %1277 = vmatpush1.msra.mxu0 0.0
        %1278 = vmatprep.subr.mxu0 0.0
        %1279 = vmatpush1.msra.mxu0 0.0
        %1280 = vmatprep.subr.mxu0 0.0
        %1281 = vmatpush1.msra.mxu0 0.0
        %1282 = vmatprep.subr.mxu0 0.0
        %1283 = vmatpush1.msra.mxu0 0.0
        %1284 = vmatprep.subr.mxu0 0.0
        %1285 = vmatpush1.msra.mxu0 0.0
        %1286 = vmatprep.subr.mxu0 0.0
        %1287 = vmatpush1.msra.mxu0 0.0
        %1288 = vmatprep.subr.mxu0 0.0
        %1289 = vmatpush1.msra.mxu0 0.0
        %1290 = vmatprep.subr.mxu0 0.0
        %1291 = vmatpush1.msra.mxu0 0.0
        %1292 = vmatprep.subr.mxu0 0.0
        %1293 = vmatpush1.msra.mxu0 0.0
        %1294 = vmatprep.subr.mxu0 0.0
        %1295 = vmatpush1.msra.mxu0 0.0
        %1296 = vmatprep.subr.mxu0 0.0
        %1297 = vmatpush1.msra.mxu0 0.0
        %1298 = vmatprep.subr.mxu0 0.0
        %1299 = vmatpush1.msra.mxu0 0.0
        %1300 = vmatprep.subr.mxu0 0.0
        %1301 = vmatpush1.msra.mxu0 0.0
        %1302 = vmatprep.subr.mxu0 0.0
        %1303 = vmatpush1.msra.mxu0 0.0
        %1304 = vmatprep.subr.mxu0 0.0
        %1305 = vmatpush1.msra.mxu0 0.0
        %1306 = vmatprep.subr.mxu0 0.0
        %1307 = vmatpush1.msra.mxu0 0.0
        %1308 = vmatprep.subr.mxu0 0.0
        %1309 = vmatpush1.msra.mxu0 0.0
        %1310 = vmatprep.subr.mxu0 0.0
        %1311 = vmatpush1.msra.mxu0 0.0
        %1312 = vmatprep.subr.mxu0 0.0
        %1313 = vmatpush1.msra.mxu0 0.0
        %1314 = vmatprep.subr.mxu0 0.0
        %1315 = vmatpush1.msra.mxu0 0.0
        %1316 = vmatprep.subr.mxu0 0.0
        %1317 = vmatpush1.msra.mxu0 0.0
        %1318 = vmatprep.subr.mxu0 0.0
        %1319 = vmatpush1.msra.mxu0 0.0
        %1320 = vmatprep.mubr.f32.mxu0 0.0
        %1321 = vmatmul.mubr.f32.gmra.mrb[0].mxu0 %v1254
        %v1322 = vpop.f32.mrb[0].mxu0
        %v1323 = vadd.f32 0.0, %v1322
        %v1324 = vpop.f32.mrb[0].mxu0
        %1325 = vdwg.mxu0
        %1326 = vrot.lane.b32.xlu0 %v628, 104
        %v1327 = vpop.permute.xlu0 %1326
        %1328 = vrot.lane.b32.xlu0 %v724, 104
        %v1329 = vpop.permute.xlu0 %1328
        %v1330 = vsel %vm828, %v1327, 0
        %v1332 = vsel %vm828, %v1329, 0
        %1334 = vmatprep.subr.mxu0 0.0
        %1335 = vmatpush1.xpose.msra.mxu0 %v1332
        %1336 = vmatprep.subr.mxu0 0.0
        %1337 = vmatpush1.xpose.msra.mxu0 0.0
        %1338 = vmatprep.subr.mxu0 0.0
        %1339 = vmatpush1.xpose.msra.mxu0 0.0
        %1340 = vmatprep.subr.mxu0 0.0
        %1341 = vmatpush1.xpose.msra.mxu0 0.0
        %1342 = vmatprep.subr.mxu0 0.0
        %1343 = vmatpush1.xpose.msra.mxu0 0.0
        %1344 = vmatprep.subr.mxu0 0.0
        %1345 = vmatpush1.xpose.msra.mxu0 0.0
        %1346 = vmatprep.subr.mxu0 0.0
        %1347 = vmatpush1.xpose.msra.mxu0 0.0
        %1348 = vmatprep.subr.mxu0 0.0
        %1349 = vmatpush1.xpose.msra.mxu0 0.0
        %1350 = vmatprep.subr.mxu0 0.0
        %1351 = vmatpush1.xpose.msra.mxu0 0.0
        %1352 = vmatprep.subr.mxu0 0.0
        %1353 = vmatpush1.xpose.msra.mxu0 0.0
        %1354 = vmatprep.subr.mxu0 0.0
        %1355 = vmatpush1.xpose.msra.mxu0 0.0
        %1356 = vmatprep.subr.mxu0 0.0
        %1357 = vmatpush1.xpose.msra.mxu0 0.0
        %1358 = vmatprep.subr.mxu0 0.0
        %1359 = vmatpush1.xpose.msra.mxu0 0.0
        %1360 = vmatprep.subr.mxu0 0.0
        %1361 = vmatpush1.xpose.msra.mxu0 0.0
        %1362 = vmatprep.subr.mxu0 0.0
        %1363 = vmatpush1.xpose.msra.mxu0 0.0
        %1364 = vmatprep.subr.mxu0 0.0
        %1365 = vmatpush1.xpose.msra.mxu0 0.0
        %1366 = vmatprep.subr.mxu0 0.0
        %1367 = vmatpush1.xpose.msra.mxu0 0.0
        %1368 = vmatprep.subr.mxu0 0.0
        %1369 = vmatpush1.xpose.msra.mxu0 0.0
        %1370 = vmatprep.subr.mxu0 0.0
        %1371 = vmatpush1.xpose.msra.mxu0 0.0
        %1372 = vmatprep.subr.mxu0 0.0
        %1373 = vmatpush1.xpose.msra.mxu0 0.0
        %1374 = vmatprep.subr.mxu0 0.0
        %1375 = vmatpush1.xpose.msra.mxu0 0.0
        %1376 = vmatprep.subr.mxu0 0.0
        %1377 = vmatpush1.xpose.msra.mxu0 0.0
        %1378 = vmatprep.subr.mxu0 0.0
        %1379 = vmatpush1.xpose.msra.mxu0 0.0
        %1380 = vmatprep.subr.mxu0 0.0
        %1381 = vmatpush1.xpose.msra.mxu0 0.0
        %1382 = vmatprep.subr.mxu0 0.0
        %1383 = vmatpush1.xpose.msra.mxu0 0.0
        %1384 = vmatprep.subr.mxu0 0.0
        %1385 = vmatpush1.xpose.msra.mxu0 0.0
        %1386 = vmatprep.subr.mxu0 0.0
        %1387 = vmatpush1.xpose.msra.mxu0 0.0
        %1388 = vmatprep.subr.mxu0 0.0
        %1389 = vmatpush1.xpose.msra.mxu0 0.0
        %1390 = vmatprep.subr.mxu0 0.0
        %1391 = vmatpush1.xpose.msra.mxu0 0.0
        %1392 = vmatprep.subr.mxu0 0.0
        %1393 = vmatpush1.xpose.msra.mxu0 0.0
        %1394 = vmatprep.subr.mxu0 0.0
        %1395 = vmatpush1.xpose.msra.mxu0 0.0
        %1396 = vmatprep.subr.mxu0 0.0
        %1397 = vmatpush1.xpose.msra.mxu0 0.0
        %1398 = vmatprep.mubr.f32.mxu0 0.0
        %1399 = vmatmul.mubr.f32.gmra.mrb[0].mxu0 %v1330
        %v1400 = vpop.f32.mrb[0].mxu0
        %v1401 = vadd.f32 0.0, %v1400
        %v1402 = vpop.f32.mrb[0].mxu0
        %1403 = vdwg.mxu0
        %v1404 = vmul.f32 %v1401, 0.35355338
        %v1405 = vsel %vm827, %v1404, 1e-09
        %v1406 = vsel %vm828, %v1405, -inf
        %1407 = vmax.xlane.f32.xlu0 %v1406
        %v1408 = vpop.xlane.xlu0 %1407
        %v1409 = vsub.f32 %v1405, %v1408
        %v1410 = vmul.f32 %v1409, 1.442695
        %v1411 = vpow.pop %v1410
        %v1412 = vsel %vm828, %v1411, 0.0
        %1413 = vadd.xlane.f32.xlu0 %v1412
        %v1414 = vpop.xlane.xlu0 %1413
        %v1415 = vrcp.pop %v1414
        %v1416 = vmul.f32 %v1411, %v1415
        %1417 = vrot.lane.b32.xlu0 %v820, 104
        %v1418 = vpop.permute.xlu0 %1417
        %v1421 = vsel %vm828, %v1416, 0
        %1423 = vmatprep.subr.mxu0 0.0
        %1424 = vmatpush1.msra.mxu0 %v1418
        %1425 = vmatprep.subr.mxu0 0.0
        %1426 = vmatpush1.msra.mxu0 0.0
        %1427 = vmatprep.subr.mxu0 0.0
        %1428 = vmatpush1.msra.mxu0 0.0
        %1429 = vmatprep.subr.mxu0 0.0
        %1430 = vmatpush1.msra.mxu0 0.0
        %1431 = vmatprep.subr.mxu0 0.0
        %1432 = vmatpush1.msra.mxu0 0.0
        %1433 = vmatprep.subr.mxu0 0.0
        %1434 = vmatpush1.msra.mxu0 0.0
        %1435 = vmatprep.subr.mxu0 0.0
        %1436 = vmatpush1.msra.mxu0 0.0
        %1437 = vmatprep.subr.mxu0 0.0
        %1438 = vmatpush1.msra.mxu0 0.0
        %1439 = vmatprep.subr.mxu0 0.0
        %1440 = vmatpush1.msra.mxu0 0.0
        %1441 = vmatprep.subr.mxu0 0.0
        %1442 = vmatpush1.msra.mxu0 0.0
        %1443 = vmatprep.subr.mxu0 0.0
        %1444 = vmatpush1.msra.mxu0 0.0
        %1445 = vmatprep.subr.mxu0 0.0
        %1446 = vmatpush1.msra.mxu0 0.0
        %1447 = vmatprep.subr.mxu0 0.0
        %1448 = vmatpush1.msra.mxu0 0.0
        %1449 = vmatprep.subr.mxu0 0.0
        %1450 = vmatpush1.msra.mxu0 0.0
        %1451 = vmatprep.subr.mxu0 0.0
        %1452 = vmatpush1.msra.mxu0 0.0
        %1453 = vmatprep.subr.mxu0 0.0
        %1454 = vmatpush1.msra.mxu0 0.0
        %1455 = vmatprep.subr.mxu0 0.0
        %1456 = vmatpush1.msra.mxu0 0.0
        %1457 = vmatprep.subr.mxu0 0.0
        %1458 = vmatpush1.msra.mxu0 0.0
        %1459 = vmatprep.subr.mxu0 0.0
        %1460 = vmatpush1.msra.mxu0 0.0
        %1461 = vmatprep.subr.mxu0 0.0
        %1462 = vmatpush1.msra.mxu0 0.0
        %1463 = vmatprep.subr.mxu0 0.0
        %1464 = vmatpush1.msra.mxu0 0.0
        %1465 = vmatprep.subr.mxu0 0.0
        %1466 = vmatpush1.msra.mxu0 0.0
        %1467 = vmatprep.subr.mxu0 0.0
        %1468 = vmatpush1.msra.mxu0 0.0
        %1469 = vmatprep.subr.mxu0 0.0
        %1470 = vmatpush1.msra.mxu0 0.0
        %1471 = vmatprep.subr.mxu0 0.0
        %1472 = vmatpush1.msra.mxu0 0.0
        %1473 = vmatprep.subr.mxu0 0.0
        %1474 = vmatpush1.msra.mxu0 0.0
        %1475 = vmatprep.subr.mxu0 0.0
        %1476 = vmatpush1.msra.mxu0 0.0
        %1477 = vmatprep.subr.mxu0 0.0
        %1478 = vmatpush1.msra.mxu0 0.0
        %1479 = vmatprep.subr.mxu0 0.0
        %1480 = vmatpush1.msra.mxu0 0.0
        %1481 = vmatprep.subr.mxu0 0.0
        %1482 = vmatpush1.msra.mxu0 0.0
        %1483 = vmatprep.subr.mxu0 0.0
        %1484 = vmatpush1.msra.mxu0 0.0
        %1485 = vmatprep.subr.mxu0 0.0
        %1486 = vmatpush1.msra.mxu0 0.0
        %1487 = vmatprep.mubr.f32.mxu0 0.0
        %1488 = vmatmul.mubr.f32.gmra.mrb[0].mxu0 %v1421
        %v1489 = vpop.f32.mrb[0].mxu0
        %v1490 = vadd.f32 0.0, %v1489
        %v1491 = vpop.f32.mrb[0].mxu0
        %1492 = vdwg.mxu0
        %1494 = vrot.lane.b32.xlu0 %v1156, 8
        %v1495 = vpop.permute.xlu0 %1494
        %1498 = vrot.lane.b32.xlu0 %v1323, 16
        %v1499 = vpop.permute.xlu0 %1498
        %1502 = vrot.lane.b32.xlu0 %v1490, 24
        %v1503 = vpop.permute.xlu0 %1502
        %v1505 = vsel %vm828, %v988, %v1495
        %vm1506 = vcmask 130048
        %v1507 = vsel %vm1506, %v1505, %v1499
        %vm1508 = vcmask 195584
        %v1509 = vsel %vm1508, %v1507, %v1503
        %v1510 = vld [vmem:[#allocation13] sm:$0xff]
        %v1511 = vld [vmem:[#allocation13 + $0x8] sm:$0xff]
        %v1512 = vld [vmem:[#allocation13 + $0x10] sm:$0xff]
        %v1513 = vld [vmem:[#allocation13 + $0x18] sm:$0xff]
        %v1514 = vld [vmem:[%s10] sm:$0x1]
        %v1516 = vlaneseq
        %v1517 = vshrl.u32 %v1516, 7
        %v1518 = vsub.s32 0, %v1517
        %v1519 = vrot.slane %v1514, %v1518
        %v1522 = vsel %vm545, %v1509, 0
        %v1525 = vsel %vm545, %v1510, 0
        %v1528 = vsel %vm545, %v1511, 0
        %v1531 = vsel %vm545, %v1512, 0
        %v1534 = vsel %vm545, %v1513, 0
        %1536 = vmatprep.subr.mxu0 0.0
        %1537 = vmatpush1.xpose.msra.mxu0 %v1525
        %1538 = vmatprep.subr.mxu0 0.0
        %1539 = vmatpush1.xpose.msra.mxu0 %v1528
        %1540 = vmatprep.subr.mxu0 0.0
        %1541 = vmatpush1.xpose.msra.mxu0 %v1531
        %1542 = vmatprep.subr.mxu0 0.0
        %1543 = vmatpush1.xpose.msra.mxu0 %v1534
        %1544 = vmatprep.subr.mxu0 0.0
        %1545 = vmatpush1.xpose.msra.mxu0 0.0
        %1546 = vmatprep.subr.mxu0 0.0
        %1547 = vmatpush1.xpose.msra.mxu0 0.0
        %1548 = vmatprep.subr.mxu0 0.0
        %1549 = vmatpush1.xpose.msra.mxu0 0.0
        %1550 = vmatprep.subr.mxu0 0.0
        %1551 = vmatpush1.xpose.msra.mxu0 0.0
        %1552 = vmatprep.subr.mxu0 0.0
        %1553 = vmatpush1.xpose.msra.mxu0 0.0
        %1554 = vmatprep.subr.mxu0 0.0
        %1555 = vmatpush1.xpose.msra.mxu0 0.0
        %1556 = vmatprep.subr.mxu0 0.0
        %1557 = vmatpush1.xpose.msra.mxu0 0.0
        %1558 = vmatprep.subr.mxu0 0.0
        %1559 = vmatpush1.xpose.msra.mxu0 0.0
        %1560 = vmatprep.subr.mxu0 0.0
        %1561 = vmatpush1.xpose.msra.mxu0 0.0
        %1562 = vmatprep.subr.mxu0 0.0
        %1563 = vmatpush1.xpose.msra.mxu0 0.0
        %1564 = vmatprep.subr.mxu0 0.0
        %1565 = vmatpush1.xpose.msra.mxu0 0.0
        %1566 = vmatprep.subr.mxu0 0.0
        %1567 = vmatpush1.xpose.msra.mxu0 0.0
        %1568 = vmatprep.subr.mxu0 0.0
        %1569 = vmatpush1.xpose.msra.mxu0 0.0
        %1570 = vmatprep.subr.mxu0 0.0
        %1571 = vmatpush1.xpose.msra.mxu0 0.0
        %1572 = vmatprep.subr.mxu0 0.0
        %1573 = vmatpush1.xpose.msra.mxu0 0.0
        %1574 = vmatprep.subr.mxu0 0.0
        %1575 = vmatpush1.xpose.msra.mxu0 0.0
        %1576 = vmatprep.subr.mxu0 0.0
        %1577 = vmatpush1.xpose.msra.mxu0 0.0
        %1578 = vmatprep.subr.mxu0 0.0
        %1579 = vmatpush1.xpose.msra.mxu0 0.0
        %1580 = vmatprep.subr.mxu0 0.0
        %1581 = vmatpush1.xpose.msra.mxu0 0.0
        %1582 = vmatprep.subr.mxu0 0.0
        %1583 = vmatpush1.xpose.msra.mxu0 0.0
        %1584 = vmatprep.subr.mxu0 0.0
        %1585 = vmatpush1.xpose.msra.mxu0 0.0
        %1586 = vmatprep.subr.mxu0 0.0
        %1587 = vmatpush1.xpose.msra.mxu0 0.0
        %1588 = vmatprep.subr.mxu0 0.0
        %1589 = vmatpush1.xpose.msra.mxu0 0.0
        %1590 = vmatprep.subr.mxu0 0.0
        %1591 = vmatpush1.xpose.msra.mxu0 0.0
        %1592 = vmatprep.subr.mxu0 0.0
        %1593 = vmatpush1.xpose.msra.mxu0 0.0
        %1594 = vmatprep.subr.mxu0 0.0
        %1595 = vmatpush1.xpose.msra.mxu0 0.0
        %1596 = vmatprep.subr.mxu0 0.0
        %1597 = vmatpush1.xpose.msra.mxu0 0.0
        %1598 = vmatprep.subr.mxu0 0.0
        %1599 = vmatpush1.xpose.msra.mxu0 0.0
        %1600 = vmatprep.mubr.f32.mxu0 0.0
        %1601 = vmatmul.mubr.f32.gmra.mrb[0].mxu0 %v1522
        %v1602 = vpop.f32.mrb[0].mxu0
        %v1603 = vadd.f32 %v1519, %v1602
        %v1604 = vpop.f32.mrb[0].mxu0
        %1605 = vdwg.mxu0
        %1606 = vst.msk [vmem:[%s530] sm:$0xff] %vm545, %v1603
        %s1607 = sand.u32 %s287, 1
        %s1608 = scalar_lea.sflag [#allocation4], %s1607
        %s1609 = sand.u32 %s287, 1
        %s1610 = smul.addr %s1609, 8
        %s1611 = scalar_lea.vmem [#allocation14], %s1610
        // Predicated region
        $region93: #{tpu_custom_call.1} parent=63 // pred_check
          %p1612 = pneg %p297
        $region94: #{tpu_custom_call.1} parent=63 // pred_check_branch
          %1614 = sbr.rel (%p1612) target = $region96
        $region95: #{tpu_custom_call.1} parent=63 // pred_region
          %s1616 = ssub.s32 128, 128
          %1617 = vsyncadd %s1608, %s1616
          %s1618 = smul.addr %s33, 128
          %s1619 = scalar_lea.hbm %s11, %s1618
          %s1621 = sshll.u32 %s1611, 4
          %s1622 = int_to_ptr.vmem [resolvable:$true] %s1621
          %1624 = dma.vmem_to_hbm [thread:$0]  %s1622, 128, %s1619, %s1608
        $region96: #{tpu_custom_call.1} parent=63 // pred_fallthru
          _
      $region64: #{tpu_custom_call.1} parent=5 // pred_fallthru
        _
      %p1625 = scmp.le.s32.totalorder 2, %s28
      // Predicated region
      $region97: #{tpu_custom_call.1} parent=5 // pred_check
        %p1626 = pneg %p1625
      $region98: #{tpu_custom_call.1} parent=5 // pred_check_branch
        %1628 = sbr.rel (%p1626) target = $region100
      $region99: #{tpu_custom_call.1} parent=5 // pred_region
        %s1629 = ssub.s32 %s28, 2
        // Predicated region
        $region101: #{tpu_custom_call.1} parent=99 // pred_check
          %p1630 = pneg %p303
        $region102: #{tpu_custom_call.1} parent=99 // pred_check_branch
          %1632 = sbr.rel (%p1630) target = $region104
        $region103: #{tpu_custom_call.1} parent=99 // pred_region
          %s1633 = sand.u32 %s288, 1
          %s1634 = scalar_lea.sflag [#allocation4], %s1633
          %s1635 = sand.u32 %s288, 1
          %s1636 = smul.addr %s1635, 8
          %s1637 = scalar_lea.vmem [#allocation14], %s1636
          %1638 = dma.done %s1634, 128
        $region104: #{tpu_custom_call.1} parent=99 // pred_fallthru
          _
      $region100: #{tpu_custom_call.1} parent=5 // pred_fallthru
        _
    $region6: #{tpu_custom_call.1} parent=1 // loop_footer
      %s32 = sadd.s32 1, %s28
    $region7: #{tpu_custom_call.1} parent=1 // loop_footer_branch
      %27 = sbr.rel target = $region3
    $region8: #{tpu_custom_call.1} parent=1 // loop_exit
      _
    %1639 = vsyncpa [#allocation3], 1
    %s1640 = scalar_lea.sflag [#allocation3], 1
    %1641 = vsyncpa %s1640, 1
    %1642 = vsyncpa [#allocation6], 1
    %s1643 = scalar_lea.sflag [#allocation6], 1
    %1644 = vsyncpa %s1643, 1
    %1645 = vsyncpa [#allocation9], 1
    %1646 = vsyncpa [#allocation12], 1
    %1647 = vsyncpa [#allocation4], 1
    %s1648 = scalar_lea.sflag [#allocation4], 1
    %1649 = vsyncpa %s1648, 1

</llo_original>
